<compile_context>
chip_gen: v7x
topology: tpu7x:2x2x1
jax: 0.10.0
libtpu: 0.0.40
codegen_flags: <defaults>
</compile_context>

<pallas_src>
import functools
import re

import jax
import jax.numpy as jnp
from jax import lax
from jax.experimental import pallas as pl
from jax.experimental.pallas import tpu as pltpu


def _normal_estimation_kernel(lhs_ref, feats_ref, qc_ref, qo_ref, out_ref, *,
                              radius, max_nn, n_bsearch, n_squarings,
                              bf16_search):
    lhs = lhs_ref[0]        # (N, 5)  [x | |x|^2 | 1], centered coordinates
    feats = feats_ref[0]    # (10, N) [1, x, upper-tri xx^T], centered, lane-dense
    qc = qc_ref[0]          # (3, TQ) centered query coordinates, lane-dense
    qo = qo_ref[0]          # (3, TQ) original query coordinates (orientation)
    n = feats.shape[1]

    qx, qy, qz = qc[0:1, :], qc[1:2, :], qc[2:3, :]          # (1, TQ)
    q_sq = qx * qx + qy * qy + qz * qz                       # (1, TQ)

    # ---- pairwise squared distances in a single MXU pass (K = 5) ----
    # d2 = |x|^2 + |q|^2 - 2 x.q  ==  [x | |x|^2 | 1] @ [-2q ; 1 ; |q|^2]
    rhs5 = jnp.concatenate(
        [-2.0 * qx, -2.0 * qy, -2.0 * qz, jnp.ones_like(q_sq), q_sq], axis=0)
    d2 = jnp.dot(lhs, rhs5, preferred_element_type=jnp.float32)      # (N, TQ)

    # ---- hybrid-search threshold: min(radius^2, max_nn-th smallest d2) ----
    # Read-only binary search; the per-iteration count is an MXU matvec.
    r2 = jnp.float32(radius * radius)
    k = jnp.float32(max_nn)
    lo0 = jnp.zeros_like(q_sq)
    hi0 = jnp.full_like(q_sq, r2)

    cmp_dtype = jnp.bfloat16 if bf16_search else jnp.float32
    d2c = d2.astype(cmp_dtype) if bf16_search else d2                # cast once
    one_c = jnp.asarray(1.0, dtype=cmp_dtype)
    zero_c = jnp.asarray(0.0, dtype=cmp_dtype)
    count_lhs = jnp.ones((8, n), cmp_dtype)    # M=8: one full MXU sublane tile

    def bs_body(_, carry):
        lo, hi = carry
        mid = 0.5 * (lo + hi)                                        # (1, TQ) f32
        mask = jnp.where(d2c <= mid.astype(cmp_dtype), one_c, zero_c)
        cnt = jnp.dot(count_lhs, mask,
                      preferred_element_type=jnp.float32)[0:1, :]    # (1, TQ)
        ge = cnt >= k
        return jnp.where(ge, lo, mid), jnp.where(ge, mid, hi)

    _, thresh = lax.fori_loop(0, n_bsearch, bs_body, (lo0, hi0))

    # Final neighbor mask in f32 (exact 0/1 -> exact counts / moments).
    w = jnp.where(d2 <= thresh, 1.0, 0.0).astype(jnp.float32)        # (N, TQ)

    # ---- fused moments: count, sum(x), sum(xx^T) in one MXU pass ----
    m = jnp.dot(feats, w, preferred_element_type=jnp.float32)        # (10, TQ)
    cnt = m[0:1, :]
    sx, sy, sz = m[1:2, :], m[2:3, :], m[3:4, :]
    sxx, sxy, sxz = m[4:5, :], m[5:6, :], m[6:7, :]
    syy, syz, szz = m[7:8, :], m[8:9, :], m[9:10, :]

    # cnt^2 * covariance (same eigenvectors, no divides needed).
    eps = jnp.float32(1e-12)
    a00 = sxx * cnt - sx * sx + eps
    a01 = sxy * cnt - sx * sy
    a02 = sxz * cnt - sx * sz
    a11 = syy * cnt - sy * sy + eps
    a12 = syz * cnt - sy * sz
    a22 = szz * cnt - sz * sz + eps

    # ---- smallest eigenvector of A == dominant eigenvector of B = tr(A)I - A ----
    tr = a00 + a11 + a22
    s = pl.reciprocal(2.0 * tr + jnp.float32(1e-30), approx=True)    # trace(B)=2 tr
    b00 = (tr - a00) * s
    b11 = (tr - a11) * s
    b22 = (tr - a22) * s
    b01 = -a01 * s
    b02 = -a02 * s
    b12 = -a12 * s

    for it in range(n_squarings):            # static, lane-dense (1,TQ) work
        n00 = b00 * b00 + b01 * b01 + b02 * b02
        n01 = b00 * b01 + b01 * b11 + b02 * b12
        n02 = b00 * b02 + b01 * b12 + b02 * b22
        n11 = b01 * b01 + b11 * b11 + b12 * b12
        n12 = b01 * b02 + b11 * b12 + b12 * b22
        n22 = b02 * b02 + b12 * b12 + b22 * b22
        if (it % 2 == 1) or (it == n_squarings - 1):
            # renormalize only every 2 squarings (and at the end); scale factor
            # cancels in the eigenvector, so approx reciprocal is exact-enough.
            s = pl.reciprocal(n00 + n11 + n22 + jnp.float32(1e-30), approx=True)
            b00, b01, b02 = n00 * s, n01 * s, n02 * s
            b11, b12, b22 = n11 * s, n12 * s, n22 * s
        else:
            b00, b01, b02 = n00, n01, n02
            b11, b12, b22 = n11, n12, n22

    # B^(2^k) ~ u u^T: take the column with the largest diagonal entry.
    use0 = jnp.logical_and(b00 >= b11, b00 >= b22)
    use1 = b11 >= b22
    v0 = jnp.where(use0, b00, jnp.where(use1, b01, b02))
    v1 = jnp.where(use0, b01, jnp.where(use1, b11, b12))
    v2 = jnp.where(use0, b02, jnp.where(use1, b12, b22))
    nrm2 = v0 * v0 + v1 * v1 + v2 * v2
    bad = nrm2 < jnp.float32(1e-24)
    v0 = jnp.where(bad, 0.0, v0)
    v1 = jnp.where(bad, 0.0, v1)
    v2 = jnp.where(bad, 1.0, v2)
    inv = lax.rsqrt(v0 * v0 + v1 * v1 + v2 * v2)
    v0, v1, v2 = v0 * inv, v1 * inv, v2 * inv

    # ---- orient towards camera at origin (flip if dot(n, -p) < 0), using the
    # ORIGINAL (un-centered) point coordinates ----
    dotp = v0 * qo[0:1, :] + v1 * qo[1:2, :] + v2 * qo[2:3, :]
    sgn = jnp.where(dotp > 0.0, -1.0, 1.0).astype(jnp.float32)

    out_ref[0] = jnp.concatenate([v0 * sgn, v1 * sgn, v2 * sgn], axis=0)  # (3,TQ)


def _round_up(v, m):
    return ((v + m - 1) // m) * m


def _tpu_generation():
    try:
        kind = jax.devices()[0].device_kind
    except Exception:
        return 6
    nums = re.findall(r"\d+", kind)
    return int(nums[0]) if nums else 6


def _pick_tq(n, gen):
    # Single tile when small; otherwise lane-aligned tiles sized so the (N, TQ)
    # slabs (f32 d2 + f32 mask + temps + bf16 copies) fit the per-gen budget.
    if n <= 512:
        return n
    budget = (22 << 20) if gen >= 7 else (56 << 20)   # v7x: 64 MiB VMEM per TC
    mult = 256 if gen >= 6 else 128                    # v6e/v7x MXU lane tiles
    bytes_per_q = 16 * n
    t = min(512, max(128, budget // bytes_per_q))
    if t >= mult:
        t = (t // mult) * mult
    else:
        t = (t // 128) * 128
    return int(max(t, 128))


def _vmem_limit_bytes(n, tq, gen, bf16_search):
    f32 = 4
    n8, n128 = _round_up(n, 8), _round_up(n, 128)
    tq128 = _round_up(tq, 128)
    slab = n8 * tq128
    est = slab * f32 * 3                      # d2(f32), final mask, live temp
    est += slab * (4 if bf16_search else 8)   # bsearch compare/mask (+ bf16 d2)
    est += 2 * n8 * 128 * f32                 # (N,5) LHS block, lane-padded, 2 bufs
    est += 2 * 16 * n128 * f32                # (10,N) feature block, 2 bufs
    est += 8 * 8 * tq128 * f32                # (3,TQ) q/out tiles, double-buffered
    est += 4 << 20                            # compiler-scratch headroom
    cap = (52 << 20) if gen >= 7 else (100 << 20)   # keep headroom under 64/128 MiB
    return int(min(max(est, 16 << 20), cap))


def normal_estimation(xyz, *, radius=0.1, max_nn=30,
                      n_bsearch=14, n_squarings=12, tq=None):
    """xyz: (B, N, 3) point clouds -> (B, N, 3) float32 oriented unit normals."""
    xyz = xyz.astype(jnp.float32)
    b, n, _ = xyz.shape
    gen = _tpu_generation()
    bf16_search = gen >= 6                    # bf16 VALU only on v6e / v7x

    if tq is None:
        tq = _pick_tq(n, gen)
    if not (tq == n or tq % 128 == 0):
        tq = n
    n_q_tiles = pl.cdiv(n, tq)

    # ---- wrapper-side precompute (hoisted out of the per-step kernel body) ----
    centroid = jnp.mean(xyz, axis=1, keepdims=True)        # (B, 1, 3)
    xc = xyz - centroid                                    # conditioning for E[xx]-E[x]E[x]
    x0, x1, x2 = xc[..., 0], xc[..., 1], xc[..., 2]        # (B, N)
    xsq = x0 * x0 + x1 * x1 + x2 * x2
    ones = jnp.ones_like(x0)
    dist_lhs = jnp.stack([x0, x1, x2, xsq, ones], axis=-1)             # (B, N, 5)
    feats = jnp.stack([ones, x0, x1, x2,
                       x0 * x0, x0 * x1, x0 * x2,
                       x1 * x1, x1 * x2, x2 * x2], axis=1)             # (B, 10, N)
    qc_t = jnp.transpose(xc, (0, 2, 1))                                # (B, 3, N)
    qo_t = jnp.transpose(xyz, (0, 2, 1))                               # (B, 3, N)

    kernel = functools.partial(
        _normal_estimation_kernel,
        radius=float(radius), max_nn=int(max_nn),
        n_bsearch=int(n_bsearch), n_squarings=int(n_squarings),
        bf16_search=bool(bf16_search))

    out_t = pl.pallas_call(
        kernel,
        out_shape=jax.ShapeDtypeStruct((b, 3, n), jnp.float32),
        grid_spec=pltpu.PrefetchScalarGridSpec(
            num_scalar_prefetch=0,
            grid=(b, n_q_tiles),
            in_specs=[
                pl.BlockSpec((1, n, 5), lambda bi, qi: (bi, 0, 0)),    # aug LHS
                pl.BlockSpec((1, 10, n), lambda bi, qi: (bi, 0, 0)),   # moments
                pl.BlockSpec((1, 3, tq), lambda bi, qi: (bi, 0, qi)),  # centered q
                pl.BlockSpec((1, 3, tq), lambda bi, qi: (bi, 0, qi)),  # original q
            ],
            out_specs=pl.BlockSpec((1, 3, tq), lambda bi, qi: (bi, 0, qi)),
        ),
        compiler_params=pltpu.CompilerParams(
            dimension_semantics=("parallel", "parallel"),
            vmem_limit_bytes=_vmem_limit_bytes(n, tq, gen, bf16_search)),
    )(dist_lhs, feats, qc_t, qo_t)

    return jnp.transpose(out_t, (0, 2, 1))    # back to (B, N, 3)


if __name__ == "__main__":
    key = jax.random.PRNGKey(0)
    B, N = 2, 64
    # points in the unit cube; radius chosen so neighborhoods are non-degenerate
    xyz = jax.random.uniform(key, (B, N, 3), dtype=jnp.float32)

    normals = normal_estimation(xyz, radius=0.35, max_nn=30)
    normals = jax.block_until_ready(normals)

    assert normals.shape == (B, N, 3)
    assert bool(jnp.all(jnp.isfinite(normals)))
    nrm = jnp.linalg.norm(normals, axis=-1)
    assert bool(jnp.all(jnp.abs(nrm - 1.0) < 1e-3))
    print("KERNEL_OK")
</pallas_src>

<mosaic_0001>
module attributes {stable_mosaic.version = 11 : i64} {
  func.func @_normal_estimation_kernel(%arg0: i32, %arg1: i32, %arg2: memref<1x64x5xf32, #tpu.memory_space<vmem>>, %arg3: memref<1x10x64xf32, #tpu.memory_space<vmem>>, %arg4: memref<1x3x64xf32, #tpu.memory_space<vmem>>, %arg5: memref<1x3x64xf32, #tpu.memory_space<vmem>>, %arg6: memref<1x3x64xf32, #tpu.memory_space<vmem>>) attributes {dimension_semantics = [#tpu.dimension_semantics<parallel>, #tpu.dimension_semantics<parallel>], iteration_bounds = array<i64: 2, 1>, scalar_prefetch = 0 : i64, scratch_operands = 0 : i64, tpu.core_type = #tpu.core_type<tc>, window_params = [{transform_indices = @transform_0, window_bounds = array<i64: 1, 64, 5>}, {transform_indices = @transform_1, window_bounds = array<i64: 1, 10, 64>}, {transform_indices = @transform_2, window_bounds = array<i64: 1, 3, 64>}, {transform_indices = @transform_3, window_bounds = array<i64: 1, 3, 64>}, {transform_indices = @transform_4, window_bounds = array<i64: 1, 3, 64>}]} {
    %c0 = arith.constant 0 : index
    %c0_0 = arith.constant 0 : index
    %c0_1 = arith.constant 0 : index
    %0 = vector.load %arg2[%c0, %c0_0, %c0_1] : memref<1x64x5xf32, #tpu.memory_space<vmem>>, vector<1x64x5xf32>
    %1 = vector.shape_cast %0 : vector<1x64x5xf32> to vector<64x5xf32>
    %c0_2 = arith.constant 0 : index
    %c0_3 = arith.constant 0 : index
    %c0_4 = arith.constant 0 : index
    %2 = vector.load %arg3[%c0_2, %c0_3, %c0_4] : memref<1x10x64xf32, #tpu.memory_space<vmem>>, vector<1x10x64xf32>
    %3 = vector.shape_cast %2 : vector<1x10x64xf32> to vector<10x64xf32>
    %c0_5 = arith.constant 0 : index
    %c0_6 = arith.constant 0 : index
    %c0_7 = arith.constant 0 : index
    %4 = vector.load %arg4[%c0_5, %c0_6, %c0_7] : memref<1x3x64xf32, #tpu.memory_space<vmem>>, vector<1x3x64xf32>
    %5 = vector.shape_cast %4 : vector<1x3x64xf32> to vector<3x64xf32>
    %c0_8 = arith.constant 0 : index
    %c0_9 = arith.constant 0 : index
    %c0_10 = arith.constant 0 : index
    %6 = vector.load %arg5[%c0_8, %c0_9, %c0_10] : memref<1x3x64xf32, #tpu.memory_space<vmem>>, vector<1x3x64xf32>
    %7 = vector.shape_cast %6 : vector<1x3x64xf32> to vector<3x64xf32>
    %8 = vector.extract_strided_slice %5 {offsets = [0, 0], sizes = [1, 64], strides = [1, 1]} : vector<3x64xf32> to vector<1x64xf32>
    %9 = vector.extract_strided_slice %5 {offsets = [1, 0], sizes = [1, 64], strides = [1, 1]} : vector<3x64xf32> to vector<1x64xf32>
    %10 = vector.extract_strided_slice %5 {offsets = [2, 0], sizes = [1, 64], strides = [1, 1]} : vector<3x64xf32> to vector<1x64xf32>
    %11 = arith.mulf %8, %8 : vector<1x64xf32>
    %12 = arith.mulf %9, %9 : vector<1x64xf32>
    %13 = arith.addf %11, %12 : vector<1x64xf32>
    %14 = arith.mulf %10, %10 : vector<1x64xf32>
    %15 = arith.addf %13, %14 : vector<1x64xf32>
    %cst = arith.constant -2.000000e+00 : f32
    %16 = vector.broadcast %cst : f32 to vector<1x64xf32>
    %17 = arith.mulf %16, %8 : vector<1x64xf32>
    %cst_11 = arith.constant -2.000000e+00 : f32
    %18 = vector.broadcast %cst_11 : f32 to vector<1x64xf32>
    %19 = arith.mulf %18, %9 : vector<1x64xf32>
    %cst_12 = arith.constant -2.000000e+00 : f32
    %20 = vector.broadcast %cst_12 : f32 to vector<1x64xf32>
    %21 = arith.mulf %20, %10 : vector<1x64xf32>
    %cst_13 = arith.constant 1.000000e+00 : f32
    %22 = vector.broadcast %cst_13 : f32 to vector<1x64xf32>
    %23 = tpu.concatenate %17, %19, %21, %22, %15 in 0 : vector<1x64xf32>, vector<1x64xf32>, vector<1x64xf32>, vector<1x64xf32>, vector<1x64xf32> -> vector<5x64xf32>
    %cst_14 = arith.constant dense<0.000000e+00> : vector<64x64xf32>
    %24 = tpu.matmul %1, %23, %cst_14 {dimension_numbers = #tpu.dot_dimension_numbers<[1], [0], [0], [1], [0, 0, 1, 1], [], []>} : vector<64x5xf32>, vector<5x64xf32>, vector<64x64xf32> -> vector<64x64xf32>
    %cst_15 = arith.constant 0.000000e+00 : f32
    %25 = vector.broadcast %cst_15 : f32 to vector<1x64xf32>
    %cst_16 = arith.constant 1.225000e-01 : f32
    %26 = vector.broadcast %cst_16 : f32 to vector<1x64xf32>
    %27 = arith.truncf %24 : vector<64x64xf32> to vector<64x64xbf16>
    %cst_17 = arith.constant 1.000000e+00 : bf16
    %28 = vector.broadcast %cst_17 : bf16 to vector<8x64xbf16>
    %cst_18 = arith.constant 1.000000e+00 : bf16
    %cst_19 = arith.constant 0.000000e+00 : bf16
    %cst_20 = arith.constant 3.000000e+01 : f32
    %c0_i32 = arith.constant 0 : i32
    %c14_i32 = arith.constant 14 : i32
    %29 = arith.addi %c0_i32, %c14_i32 : i32
    %c1_i32 = arith.constant 1 : i32
    %30:2 = scf.for %arg7 = %c0_i32 to %29 step %c1_i32 iter_args(%arg8 = %25, %arg9 = %26) -> (vector<1x64xf32>, vector<1x64xf32>)  : i32 {
      %571 = arith.addf %arg8, %arg9 : vector<1x64xf32>
      %cst_48 = arith.constant 5.000000e-01 : f32
      %572 = vector.broadcast %cst_48 : f32 to vector<1x64xf32>
      %573 = arith.mulf %572, %571 : vector<1x64xf32>
      %574 = arith.truncf %573 : vector<1x64xf32> to vector<1x64xbf16>
      %575 = vector.broadcast %574 : vector<1x64xbf16> to vector<64x64xbf16>
      %576 = arith.cmpf ole, %27, %575 : vector<64x64xbf16>
      %577 = vector.broadcast %cst_18 : bf16 to vector<64x64xbf16>
      %578 = vector.broadcast %cst_19 : bf16 to vector<64x64xbf16>
      %579 = arith.select %576, %577, %578 : vector<64x64xi1>, vector<64x64xbf16>
      %cst_49 = arith.constant dense<0.000000e+00> : vector<8x64xf32>
      %580 = tpu.matmul %28, %579, %cst_49 {dimension_numbers = #tpu.dot_dimension_numbers<[1], [0], [0], [1], [0, 0, 1, 1], [], []>} : vector<8x64xbf16>, vector<64x64xbf16>, vector<8x64xf32> -> vector<8x64xf32>
      %581 = vector.extract_strided_slice %580 {offsets = [0, 0], sizes = [1, 64], strides = [1, 1]} : vector<8x64xf32> to vector<1x64xf32>
      %582 = vector.broadcast %cst_20 : f32 to vector<1x64xf32>
      %583 = arith.cmpf oge, %581, %582 : vector<1x64xf32>
      %584 = arith.select %583, %arg8, %573 : vector<1x64xi1>, vector<1x64xf32>
      %585 = arith.select %583, %573, %arg9 : vector<1x64xi1>, vector<1x64xf32>
      scf.yield %584, %585 : vector<1x64xf32>, vector<1x64xf32>
    }
    %31 = vector.broadcast %30#1 : vector<1x64xf32> to vector<64x64xf32>
    %32 = arith.cmpf ole, %24, %31 : vector<64x64xf32>
    %cst_21 = arith.constant 1.000000e+00 : f32
    %cst_22 = arith.constant 0.000000e+00 : f32
    %33 = vector.broadcast %cst_21 : f32 to vector<64x64xf32>
    %34 = vector.broadcast %cst_22 : f32 to vector<64x64xf32>
    %35 = arith.select %32, %33, %34 : vector<64x64xi1>, vector<64x64xf32>
    %cst_23 = arith.constant dense<0.000000e+00> : vector<10x64xf32>
    %36 = tpu.matmul %3, %35, %cst_23 {dimension_numbers = #tpu.dot_dimension_numbers<[1], [0], [0], [1], [0, 0, 1, 1], [], []>} : vector<10x64xf32>, vector<64x64xf32>, vector<10x64xf32> -> vector<10x64xf32>
    %37 = vector.extract_strided_slice %36 {offsets = [0, 0], sizes = [1, 64], strides = [1, 1]} : vector<10x64xf32> to vector<1x64xf32>
    %38 = vector.extract_strided_slice %36 {offsets = [1, 0], sizes = [1, 64], strides = [1, 1]} : vector<10x64xf32> to vector<1x64xf32>
    %39 = vector.extract_strided_slice %36 {offsets = [2, 0], sizes = [1, 64], strides = [1, 1]} : vector<10x64xf32> to vector<1x64xf32>
    %40 = vector.extract_strided_slice %36 {offsets = [3, 0], sizes = [1, 64], strides = [1, 1]} : vector<10x64xf32> to vector<1x64xf32>
    %41 = vector.extract_strided_slice %36 {offsets = [4, 0], sizes = [1, 64], strides = [1, 1]} : vector<10x64xf32> to vector<1x64xf32>
    %42 = vector.extract_strided_slice %36 {offsets = [5, 0], sizes = [1, 64], strides = [1, 1]} : vector<10x64xf32> to vector<1x64xf32>
    %43 = vector.extract_strided_slice %36 {offsets = [6, 0], sizes = [1, 64], strides = [1, 1]} : vector<10x64xf32> to vector<1x64xf32>
    %44 = vector.extract_strided_slice %36 {offsets = [7, 0], sizes = [1, 64], strides = [1, 1]} : vector<10x64xf32> to vector<1x64xf32>
    %45 = vector.extract_strided_slice %36 {offsets = [8, 0], sizes = [1, 64], strides = [1, 1]} : vector<10x64xf32> to vector<1x64xf32>
    %46 = vector.extract_strided_slice %36 {offsets = [9, 0], sizes = [1, 64], strides = [1, 1]} : vector<10x64xf32> to vector<1x64xf32>
    %47 = arith.mulf %41, %37 : vector<1x64xf32>
    %48 = arith.mulf %38, %38 : vector<1x64xf32>
    %49 = arith.subf %47, %48 : vector<1x64xf32>
    %cst_24 = arith.constant 9.99999996E-13 : f32
    %50 = vector.broadcast %cst_24 : f32 to vector<1x64xf32>
    %51 = arith.addf %49, %50 : vector<1x64xf32>
    %52 = arith.mulf %42, %37 : vector<1x64xf32>
    %53 = arith.mulf %38, %39 : vector<1x64xf32>
    %54 = arith.subf %52, %53 : vector<1x64xf32>
    %55 = arith.mulf %43, %37 : vector<1x64xf32>
    %56 = arith.mulf %38, %40 : vector<1x64xf32>
    %57 = arith.subf %55, %56 : vector<1x64xf32>
    %58 = arith.mulf %44, %37 : vector<1x64xf32>
    %59 = arith.mulf %39, %39 : vector<1x64xf32>
    %60 = arith.subf %58, %59 : vector<1x64xf32>
    %cst_25 = arith.constant 9.99999996E-13 : f32
    %61 = vector.broadcast %cst_25 : f32 to vector<1x64xf32>
    %62 = arith.addf %60, %61 : vector<1x64xf32>
    %63 = arith.mulf %45, %37 : vector<1x64xf32>
    %64 = arith.mulf %39, %40 : vector<1x64xf32>
    %65 = arith.subf %63, %64 : vector<1x64xf32>
    %66 = arith.mulf %46, %37 : vector<1x64xf32>
    %67 = arith.mulf %40, %40 : vector<1x64xf32>
    %68 = arith.subf %66, %67 : vector<1x64xf32>
    %cst_26 = arith.constant 9.99999996E-13 : f32
    %69 = vector.broadcast %cst_26 : f32 to vector<1x64xf32>
    %70 = arith.addf %68, %69 : vector<1x64xf32>
    %71 = arith.addf %51, %62 : vector<1x64xf32>
    %72 = arith.addf %71, %70 : vector<1x64xf32>
    %cst_27 = arith.constant 2.000000e+00 : f32
    %73 = vector.broadcast %cst_27 : f32 to vector<1x64xf32>
    %74 = arith.mulf %73, %72 : vector<1x64xf32>
    %cst_28 = arith.constant 1.000000e-30 : f32
    %75 = vector.broadcast %cst_28 : f32 to vector<1x64xf32>
    %76 = arith.addf %74, %75 : vector<1x64xf32>
    %77 = tpu.reciprocal %76 {approx = true} : vector<1x64xf32> -> vector<1x64xf32>
    %78 = arith.subf %72, %51 : vector<1x64xf32>
    %79 = arith.mulf %78, %77 : vector<1x64xf32>
    %80 = arith.subf %72, %62 : vector<1x64xf32>
    %81 = arith.mulf %80, %77 : vector<1x64xf32>
    %82 = arith.subf %72, %70 : vector<1x64xf32>
    %83 = arith.mulf %82, %77 : vector<1x64xf32>
    %cst_29 = arith.constant 0.000000e+00 : f32
    %84 = vector.broadcast %cst_29 : f32 to vector<1x64xf32>
    %85 = arith.subf %84, %54 : vector<1x64xf32>
    %86 = arith.mulf %85, %77 : vector<1x64xf32>
    %cst_30 = arith.constant 0.000000e+00 : f32
    %87 = vector.broadcast %cst_30 : f32 to vector<1x64xf32>
    %88 = arith.subf %87, %57 : vector<1x64xf32>
    %89 = arith.mulf %88, %77 : vector<1x64xf32>
    %cst_31 = arith.constant 0.000000e+00 : f32
    %90 = vector.broadcast %cst_31 : f32 to vector<1x64xf32>
    %91 = arith.subf %90, %65 : vector<1x64xf32>
    %92 = arith.mulf %91, %77 : vector<1x64xf32>
    %93 = arith.mulf %79, %79 : vector<1x64xf32>
    %94 = arith.mulf %86, %86 : vector<1x64xf32>
    %95 = arith.addf %93, %94 : vector<1x64xf32>
    %96 = arith.mulf %89, %89 : vector<1x64xf32>
    %97 = arith.addf %95, %96 : vector<1x64xf32>
    %98 = arith.mulf %79, %86 : vector<1x64xf32>
    %99 = arith.mulf %86, %81 : vector<1x64xf32>
    %100 = arith.addf %98, %99 : vector<1x64xf32>
    %101 = arith.mulf %89, %92 : vector<1x64xf32>
    %102 = arith.addf %100, %101 : vector<1x64xf32>
    %103 = arith.mulf %79, %89 : vector<1x64xf32>
    %104 = arith.mulf %86, %92 : vector<1x64xf32>
    %105 = arith.addf %103, %104 : vector<1x64xf32>
    %106 = arith.mulf %89, %83 : vector<1x64xf32>
    %107 = arith.addf %105, %106 : vector<1x64xf32>
    %108 = arith.mulf %86, %86 : vector<1x64xf32>
    %109 = arith.mulf %81, %81 : vector<1x64xf32>
    %110 = arith.addf %108, %109 : vector<1x64xf32>
    %111 = arith.mulf %92, %92 : vector<1x64xf32>
    %112 = arith.addf %110, %111 : vector<1x64xf32>
    %113 = arith.mulf %86, %89 : vector<1x64xf32>
    %114 = arith.mulf %81, %92 : vector<1x64xf32>
    %115 = arith.addf %113, %114 : vector<1x64xf32>
    %116 = arith.mulf %92, %83 : vector<1x64xf32>
    %117 = arith.addf %115, %116 : vector<1x64xf32>
    %118 = arith.mulf %89, %89 : vector<1x64xf32>
    %119 = arith.mulf %92, %92 : vector<1x64xf32>
    %120 = arith.addf %118, %119 : vector<1x64xf32>
    %121 = arith.mulf %83, %83 : vector<1x64xf32>
    %122 = arith.addf %120, %121 : vector<1x64xf32>
    %123 = arith.mulf %97, %97 : vector<1x64xf32>
    %124 = arith.mulf %102, %102 : vector<1x64xf32>
    %125 = arith.addf %123, %124 : vector<1x64xf32>
    %126 = arith.mulf %107, %107 : vector<1x64xf32>
    %127 = arith.addf %125, %126 : vector<1x64xf32>
    %128 = arith.mulf %97, %102 : vector<1x64xf32>
    %129 = arith.mulf %102, %112 : vector<1x64xf32>
    %130 = arith.addf %128, %129 : vector<1x64xf32>
    %131 = arith.mulf %107, %117 : vector<1x64xf32>
    %132 = arith.addf %130, %131 : vector<1x64xf32>
    %133 = arith.mulf %97, %107 : vector<1x64xf32>
    %134 = arith.mulf %102, %117 : vector<1x64xf32>
    %135 = arith.addf %133, %134 : vector<1x64xf32>
    %136 = arith.mulf %107, %122 : vector<1x64xf32>
    %137 = arith.addf %135, %136 : vector<1x64xf32>
    %138 = arith.mulf %102, %102 : vector<1x64xf32>
    %139 = arith.mulf %112, %112 : vector<1x64xf32>
    %140 = arith.addf %138, %139 : vector<1x64xf32>
    %141 = arith.mulf %117, %117 : vector<1x64xf32>
    %142 = arith.addf %140, %141 : vector<1x64xf32>
    %143 = arith.mulf %102, %107 : vector<1x64xf32>
    %144 = arith.mulf %112, %117 : vector<1x64xf32>
    %145 = arith.addf %143, %144 : vector<1x64xf32>
    %146 = arith.mulf %117, %122 : vector<1x64xf32>
    %147 = arith.addf %145, %146 : vector<1x64xf32>
    %148 = arith.mulf %107, %107 : vector<1x64xf32>
    %149 = arith.mulf %117, %117 : vector<1x64xf32>
    %150 = arith.addf %148, %149 : vector<1x64xf32>
    %151 = arith.mulf %122, %122 : vector<1x64xf32>
    %152 = arith.addf %150, %151 : vector<1x64xf32>
    %153 = arith.addf %127, %142 : vector<1x64xf32>
    %154 = arith.addf %153, %152 : vector<1x64xf32>
    %cst_32 = arith.constant 1.000000e-30 : f32
    %155 = vector.broadcast %cst_32 : f32 to vector<1x64xf32>
    %156 = arith.addf %154, %155 : vector<1x64xf32>
    %157 = tpu.reciprocal %156 {approx = true} : vector<1x64xf32> -> vector<1x64xf32>
    %158 = arith.mulf %127, %157 : vector<1x64xf32>
    %159 = arith.mulf %132, %157 : vector<1x64xf32>
    %160 = arith.mulf %137, %157 : vector<1x64xf32>
    %161 = arith.mulf %142, %157 : vector<1x64xf32>
    %162 = arith.mulf %147, %157 : vector<1x64xf32>
    %163 = arith.mulf %152, %157 : vector<1x64xf32>
    %164 = arith.mulf %158, %158 : vector<1x64xf32>
    %165 = arith.mulf %159, %159 : vector<1x64xf32>
    %166 = arith.addf %164, %165 : vector<1x64xf32>
    %167 = arith.mulf %160, %160 : vector<1x64xf32>
    %168 = arith.addf %166, %167 : vector<1x64xf32>
    %169 = arith.mulf %158, %159 : vector<1x64xf32>
    %170 = arith.mulf %159, %161 : vector<1x64xf32>
    %171 = arith.addf %169, %170 : vector<1x64xf32>
    %172 = arith.mulf %160, %162 : vector<1x64xf32>
    %173 = arith.addf %171, %172 : vector<1x64xf32>
    %174 = arith.mulf %158, %160 : vector<1x64xf32>
    %175 = arith.mulf %159, %162 : vector<1x64xf32>
    %176 = arith.addf %174, %175 : vector<1x64xf32>
    %177 = arith.mulf %160, %163 : vector<1x64xf32>
    %178 = arith.addf %176, %177 : vector<1x64xf32>
    %179 = arith.mulf %159, %159 : vector<1x64xf32>
    %180 = arith.mulf %161, %161 : vector<1x64xf32>
    %181 = arith.addf %179, %180 : vector<1x64xf32>
    %182 = arith.mulf %162, %162 : vector<1x64xf32>
    %183 = arith.addf %181, %182 : vector<1x64xf32>
    %184 = arith.mulf %159, %160 : vector<1x64xf32>
    %185 = arith.mulf %161, %162 : vector<1x64xf32>
    %186 = arith.addf %184, %185 : vector<1x64xf32>
    %187 = arith.mulf %162, %163 : vector<1x64xf32>
    %188 = arith.addf %186, %187 : vector<1x64xf32>
    %189 = arith.mulf %160, %160 : vector<1x64xf32>
    %190 = arith.mulf %162, %162 : vector<1x64xf32>
    %191 = arith.addf %189, %190 : vector<1x64xf32>
    %192 = arith.mulf %163, %163 : vector<1x64xf32>
    %193 = arith.addf %191, %192 : vector<1x64xf32>
    %194 = arith.mulf %168, %168 : vector<1x64xf32>
    %195 = arith.mulf %173, %173 : vector<1x64xf32>
    %196 = arith.addf %194, %195 : vector<1x64xf32>
    %197 = arith.mulf %178, %178 : vector<1x64xf32>
    %198 = arith.addf %196, %197 : vector<1x64xf32>
    %199 = arith.mulf %168, %173 : vector<1x64xf32>
    %200 = arith.mulf %173, %183 : vector<1x64xf32>
    %201 = arith.addf %199, %200 : vector<1x64xf32>
    %202 = arith.mulf %178, %188 : vector<1x64xf32>
    %203 = arith.addf %201, %202 : vector<1x64xf32>
    %204 = arith.mulf %168, %178 : vector<1x64xf32>
    %205 = arith.mulf %173, %188 : vector<1x64xf32>
    %206 = arith.addf %204, %205 : vector<1x64xf32>
    %207 = arith.mulf %178, %193 : vector<1x64xf32>
    %208 = arith.addf %206, %207 : vector<1x64xf32>
    %209 = arith.mulf %173, %173 : vector<1x64xf32>
    %210 = arith.mulf %183, %183 : vector<1x64xf32>
    %211 = arith.addf %209, %210 : vector<1x64xf32>
    %212 = arith.mulf %188, %188 : vector<1x64xf32>
    %213 = arith.addf %211, %212 : vector<1x64xf32>
    %214 = arith.mulf %173, %178 : vector<1x64xf32>
    %215 = arith.mulf %183, %188 : vector<1x64xf32>
    %216 = arith.addf %214, %215 : vector<1x64xf32>
    %217 = arith.mulf %188, %193 : vector<1x64xf32>
    %218 = arith.addf %216, %217 : vector<1x64xf32>
    %219 = arith.mulf %178, %178 : vector<1x64xf32>
    %220 = arith.mulf %188, %188 : vector<1x64xf32>
    %221 = arith.addf %219, %220 : vector<1x64xf32>
    %222 = arith.mulf %193, %193 : vector<1x64xf32>
    %223 = arith.addf %221, %222 : vector<1x64xf32>
    %224 = arith.addf %198, %213 : vector<1x64xf32>
    %225 = arith.addf %224, %223 : vector<1x64xf32>
    %cst_33 = arith.constant 1.000000e-30 : f32
    %226 = vector.broadcast %cst_33 : f32 to vector<1x64xf32>
    %227 = arith.addf %225, %226 : vector<1x64xf32>
    %228 = tpu.reciprocal %227 {approx = true} : vector<1x64xf32> -> vector<1x64xf32>
    %229 = arith.mulf %198, %228 : vector<1x64xf32>
    %230 = arith.mulf %203, %228 : vector<1x64xf32>
    %231 = arith.mulf %208, %228 : vector<1x64xf32>
    %232 = arith.mulf %213, %228 : vector<1x64xf32>
    %233 = arith.mulf %218, %228 : vector<1x64xf32>
    %234 = arith.mulf %223, %228 : vector<1x64xf32>
    %235 = arith.mulf %229, %229 : vector<1x64xf32>
    %236 = arith.mulf %230, %230 : vector<1x64xf32>
    %237 = arith.addf %235, %236 : vector<1x64xf32>
    %238 = arith.mulf %231, %231 : vector<1x64xf32>
    %239 = arith.addf %237, %238 : vector<1x64xf32>
    %240 = arith.mulf %229, %230 : vector<1x64xf32>
    %241 = arith.mulf %230, %232 : vector<1x64xf32>
    %242 = arith.addf %240, %241 : vector<1x64xf32>
    %243 = arith.mulf %231, %233 : vector<1x64xf32>
    %244 = arith.addf %242, %243 : vector<1x64xf32>
    %245 = arith.mulf %229, %231 : vector<1x64xf32>
    %246 = arith.mulf %230, %233 : vector<1x64xf32>
    %247 = arith.addf %245, %246 : vector<1x64xf32>
    %248 = arith.mulf %231, %234 : vector<1x64xf32>
    %249 = arith.addf %247, %248 : vector<1x64xf32>
    %250 = arith.mulf %230, %230 : vector<1x64xf32>
    %251 = arith.mulf %232, %232 : vector<1x64xf32>
    %252 = arith.addf %250, %251 : vector<1x64xf32>
    %253 = arith.mulf %233, %233 : vector<1x64xf32>
    %254 = arith.addf %252, %253 : vector<1x64xf32>
    %255 = arith.mulf %230, %231 : vector<1x64xf32>
    %256 = arith.mulf %232, %233 : vector<1x64xf32>
    %257 = arith.addf %255, %256 : vector<1x64xf32>
    %258 = arith.mulf %233, %234 : vector<1x64xf32>
    %259 = arith.addf %257, %258 : vector<1x64xf32>
    %260 = arith.mulf %231, %231 : vector<1x64xf32>
    %261 = arith.mulf %233, %233 : vector<1x64xf32>
    %262 = arith.addf %260, %261 : vector<1x64xf32>
    %263 = arith.mulf %234, %234 : vector<1x64xf32>
    %264 = arith.addf %262, %263 : vector<1x64xf32>
    %265 = arith.mulf %239, %239 : vector<1x64xf32>
    %266 = arith.mulf %244, %244 : vector<1x64xf32>
    %267 = arith.addf %265, %266 : vector<1x64xf32>
    %268 = arith.mulf %249, %249 : vector<1x64xf32>
    %269 = arith.addf %267, %268 : vector<1x64xf32>
    %270 = arith.mulf %239, %244 : vector<1x64xf32>
    %271 = arith.mulf %244, %254 : vector<1x64xf32>
    %272 = arith.addf %270, %271 : vector<1x64xf32>
    %273 = arith.mulf %249, %259 : vector<1x64xf32>
    %274 = arith.addf %272, %273 : vector<1x64xf32>
    %275 = arith.mulf %239, %249 : vector<1x64xf32>
    %276 = arith.mulf %244, %259 : vector<1x64xf32>
    %277 = arith.addf %275, %276 : vector<1x64xf32>
    %278 = arith.mulf %249, %264 : vector<1x64xf32>
    %279 = arith.addf %277, %278 : vector<1x64xf32>
    %280 = arith.mulf %244, %244 : vector<1x64xf32>
    %281 = arith.mulf %254, %254 : vector<1x64xf32>
    %282 = arith.addf %280, %281 : vector<1x64xf32>
    %283 = arith.mulf %259, %259 : vector<1x64xf32>
    %284 = arith.addf %282, %283 : vector<1x64xf32>
    %285 = arith.mulf %244, %249 : vector<1x64xf32>
    %286 = arith.mulf %254, %259 : vector<1x64xf32>
    %287 = arith.addf %285, %286 : vector<1x64xf32>
    %288 = arith.mulf %259, %264 : vector<1x64xf32>
    %289 = arith.addf %287, %288 : vector<1x64xf32>
    %290 = arith.mulf %249, %249 : vector<1x64xf32>
    %291 = arith.mulf %259, %259 : vector<1x64xf32>
    %292 = arith.addf %290, %291 : vector<1x64xf32>
    %293 = arith.mulf %264, %264 : vector<1x64xf32>
    %294 = arith.addf %292, %293 : vector<1x64xf32>
    %295 = arith.addf %269, %284 : vector<1x64xf32>
    %296 = arith.addf %295, %294 : vector<1x64xf32>
    %cst_34 = arith.constant 1.000000e-30 : f32
    %297 = vector.broadcast %cst_34 : f32 to vector<1x64xf32>
    %298 = arith.addf %296, %297 : vector<1x64xf32>
    %299 = tpu.reciprocal %298 {approx = true} : vector<1x64xf32> -> vector<1x64xf32>
    %300 = arith.mulf %269, %299 : vector<1x64xf32>
    %301 = arith.mulf %274, %299 : vector<1x64xf32>
    %302 = arith.mulf %279, %299 : vector<1x64xf32>
    %303 = arith.mulf %284, %299 : vector<1x64xf32>
    %304 = arith.mulf %289, %299 : vector<1x64xf32>
    %305 = arith.mulf %294, %299 : vector<1x64xf32>
    %306 = arith.mulf %300, %300 : vector<1x64xf32>
    %307 = arith.mulf %301, %301 : vector<1x64xf32>
    %308 = arith.addf %306, %307 : vector<1x64xf32>
    %309 = arith.mulf %302, %302 : vector<1x64xf32>
    %310 = arith.addf %308, %309 : vector<1x64xf32>
    %311 = arith.mulf %300, %301 : vector<1x64xf32>
    %312 = arith.mulf %301, %303 : vector<1x64xf32>
    %313 = arith.addf %311, %312 : vector<1x64xf32>
    %314 = arith.mulf %302, %304 : vector<1x64xf32>
    %315 = arith.addf %313, %314 : vector<1x64xf32>
    %316 = arith.mulf %300, %302 : vector<1x64xf32>
    %317 = arith.mulf %301, %304 : vector<1x64xf32>
    %318 = arith.addf %316, %317 : vector<1x64xf32>
    %319 = arith.mulf %302, %305 : vector<1x64xf32>
    %320 = arith.addf %318, %319 : vector<1x64xf32>
    %321 = arith.mulf %301, %301 : vector<1x64xf32>
    %322 = arith.mulf %303, %303 : vector<1x64xf32>
    %323 = arith.addf %321, %322 : vector<1x64xf32>
    %324 = arith.mulf %304, %304 : vector<1x64xf32>
    %325 = arith.addf %323, %324 : vector<1x64xf32>
    %326 = arith.mulf %301, %302 : vector<1x64xf32>
    %327 = arith.mulf %303, %304 : vector<1x64xf32>
    %328 = arith.addf %326, %327 : vector<1x64xf32>
    %329 = arith.mulf %304, %305 : vector<1x64xf32>
    %330 = arith.addf %328, %329 : vector<1x64xf32>
    %331 = arith.mulf %302, %302 : vector<1x64xf32>
    %332 = arith.mulf %304, %304 : vector<1x64xf32>
    %333 = arith.addf %331, %332 : vector<1x64xf32>
    %334 = arith.mulf %305, %305 : vector<1x64xf32>
    %335 = arith.addf %333, %334 : vector<1x64xf32>
    %336 = arith.mulf %310, %310 : vector<1x64xf32>
    %337 = arith.mulf %315, %315 : vector<1x64xf32>
    %338 = arith.addf %336, %337 : vector<1x64xf32>
    %339 = arith.mulf %320, %320 : vector<1x64xf32>
    %340 = arith.addf %338, %339 : vector<1x64xf32>
    %341 = arith.mulf %310, %315 : vector<1x64xf32>
    %342 = arith.mulf %315, %325 : vector<1x64xf32>
    %343 = arith.addf %341, %342 : vector<1x64xf32>
    %344 = arith.mulf %320, %330 : vector<1x64xf32>
    %345 = arith.addf %343, %344 : vector<1x64xf32>
    %346 = arith.mulf %310, %320 : vector<1x64xf32>
    %347 = arith.mulf %315, %330 : vector<1x64xf32>
    %348 = arith.addf %346, %347 : vector<1x64xf32>
    %349 = arith.mulf %320, %335 : vector<1x64xf32>
    %350 = arith.addf %348, %349 : vector<1x64xf32>
    %351 = arith.mulf %315, %315 : vector<1x64xf32>
    %352 = arith.mulf %325, %325 : vector<1x64xf32>
    %353 = arith.addf %351, %352 : vector<1x64xf32>
    %354 = arith.mulf %330, %330 : vector<1x64xf32>
    %355 = arith.addf %353, %354 : vector<1x64xf32>
    %356 = arith.mulf %315, %320 : vector<1x64xf32>
    %357 = arith.mulf %325, %330 : vector<1x64xf32>
    %358 = arith.addf %356, %357 : vector<1x64xf32>
    %359 = arith.mulf %330, %335 : vector<1x64xf32>
    %360 = arith.addf %358, %359 : vector<1x64xf32>
    %361 = arith.mulf %320, %320 : vector<1x64xf32>
    %362 = arith.mulf %330, %330 : vector<1x64xf32>
    %363 = arith.addf %361, %362 : vector<1x64xf32>
    %364 = arith.mulf %335, %335 : vector<1x64xf32>
    %365 = arith.addf %363, %364 : vector<1x64xf32>
    %366 = arith.addf %340, %355 : vector<1x64xf32>
    %367 = arith.addf %366, %365 : vector<1x64xf32>
    %cst_35 = arith.constant 1.000000e-30 : f32
    %368 = vector.broadcast %cst_35 : f32 to vector<1x64xf32>
    %369 = arith.addf %367, %368 : vector<1x64xf32>
    %370 = tpu.reciprocal %369 {approx = true} : vector<1x64xf32> -> vector<1x64xf32>
    %371 = arith.mulf %340, %370 : vector<1x64xf32>
    %372 = arith.mulf %345, %370 : vector<1x64xf32>
    %373 = arith.mulf %350, %370 : vector<1x64xf32>
    %374 = arith.mulf %355, %370 : vector<1x64xf32>
    %375 = arith.mulf %360, %370 : vector<1x64xf32>
    %376 = arith.mulf %365, %370 : vector<1x64xf32>
    %377 = arith.mulf %371, %371 : vector<1x64xf32>
    %378 = arith.mulf %372, %372 : vector<1x64xf32>
    %379 = arith.addf %377, %378 : vector<1x64xf32>
    %380 = arith.mulf %373, %373 : vector<1x64xf32>
    %381 = arith.addf %379, %380 : vector<1x64xf32>
    %382 = arith.mulf %371, %372 : vector<1x64xf32>
    %383 = arith.mulf %372, %374 : vector<1x64xf32>
    %384 = arith.addf %382, %383 : vector<1x64xf32>
    %385 = arith.mulf %373, %375 : vector<1x64xf32>
    %386 = arith.addf %384, %385 : vector<1x64xf32>
    %387 = arith.mulf %371, %373 : vector<1x64xf32>
    %388 = arith.mulf %372, %375 : vector<1x64xf32>
    %389 = arith.addf %387, %388 : vector<1x64xf32>
    %390 = arith.mulf %373, %376 : vector<1x64xf32>
    %391 = arith.addf %389, %390 : vector<1x64xf32>
    %392 = arith.mulf %372, %372 : vector<1x64xf32>
    %393 = arith.mulf %374, %374 : vector<1x64xf32>
    %394 = arith.addf %392, %393 : vector<1x64xf32>
    %395 = arith.mulf %375, %375 : vector<1x64xf32>
    %396 = arith.addf %394, %395 : vector<1x64xf32>
    %397 = arith.mulf %372, %373 : vector<1x64xf32>
    %398 = arith.mulf %374, %375 : vector<1x64xf32>
    %399 = arith.addf %397, %398 : vector<1x64xf32>
    %400 = arith.mulf %375, %376 : vector<1x64xf32>
    %401 = arith.addf %399, %400 : vector<1x64xf32>
    %402 = arith.mulf %373, %373 : vector<1x64xf32>
    %403 = arith.mulf %375, %375 : vector<1x64xf32>
    %404 = arith.addf %402, %403 : vector<1x64xf32>
    %405 = arith.mulf %376, %376 : vector<1x64xf32>
    %406 = arith.addf %404, %405 : vector<1x64xf32>
    %407 = arith.mulf %381, %381 : vector<1x64xf32>
    %408 = arith.mulf %386, %386 : vector<1x64xf32>
    %409 = arith.addf %407, %408 : vector<1x64xf32>
    %410 = arith.mulf %391, %391 : vector<1x64xf32>
    %411 = arith.addf %409, %410 : vector<1x64xf32>
    %412 = arith.mulf %381, %386 : vector<1x64xf32>
    %413 = arith.mulf %386, %396 : vector<1x64xf32>
    %414 = arith.addf %412, %413 : vector<1x64xf32>
    %415 = arith.mulf %391, %401 : vector<1x64xf32>
    %416 = arith.addf %414, %415 : vector<1x64xf32>
    %417 = arith.mulf %381, %391 : vector<1x64xf32>
    %418 = arith.mulf %386, %401 : vector<1x64xf32>
    %419 = arith.addf %417, %418 : vector<1x64xf32>
    %420 = arith.mulf %391, %406 : vector<1x64xf32>
    %421 = arith.addf %419, %420 : vector<1x64xf32>
    %422 = arith.mulf %386, %386 : vector<1x64xf32>
    %423 = arith.mulf %396, %396 : vector<1x64xf32>
    %424 = arith.addf %422, %423 : vector<1x64xf32>
    %425 = arith.mulf %401, %401 : vector<1x64xf32>
    %426 = arith.addf %424, %425 : vector<1x64xf32>
    %427 = arith.mulf %386, %391 : vector<1x64xf32>
    %428 = arith.mulf %396, %401 : vector<1x64xf32>
    %429 = arith.addf %427, %428 : vector<1x64xf32>
    %430 = arith.mulf %401, %406 : vector<1x64xf32>
    %431 = arith.addf %429, %430 : vector<1x64xf32>
    %432 = arith.mulf %391, %391 : vector<1x64xf32>
    %433 = arith.mulf %401, %401 : vector<1x64xf32>
    %434 = arith.addf %432, %433 : vector<1x64xf32>
    %435 = arith.mulf %406, %406 : vector<1x64xf32>
    %436 = arith.addf %434, %435 : vector<1x64xf32>
    %437 = arith.addf %411, %426 : vector<1x64xf32>
    %438 = arith.addf %437, %436 : vector<1x64xf32>
    %cst_36 = arith.constant 1.000000e-30 : f32
    %439 = vector.broadcast %cst_36 : f32 to vector<1x64xf32>
    %440 = arith.addf %438, %439 : vector<1x64xf32>
    %441 = tpu.reciprocal %440 {approx = true} : vector<1x64xf32> -> vector<1x64xf32>
    %442 = arith.mulf %411, %441 : vector<1x64xf32>
    %443 = arith.mulf %416, %441 : vector<1x64xf32>
    %444 = arith.mulf %421, %441 : vector<1x64xf32>
    %445 = arith.mulf %426, %441 : vector<1x64xf32>
    %446 = arith.mulf %431, %441 : vector<1x64xf32>
    %447 = arith.mulf %436, %441 : vector<1x64xf32>
    %448 = arith.mulf %442, %442 : vector<1x64xf32>
    %449 = arith.mulf %443, %443 : vector<1x64xf32>
    %450 = arith.addf %448, %449 : vector<1x64xf32>
    %451 = arith.mulf %444, %444 : vector<1x64xf32>
    %452 = arith.addf %450, %451 : vector<1x64xf32>
    %453 = arith.mulf %442, %443 : vector<1x64xf32>
    %454 = arith.mulf %443, %445 : vector<1x64xf32>
    %455 = arith.addf %453, %454 : vector<1x64xf32>
    %456 = arith.mulf %444, %446 : vector<1x64xf32>
    %457 = arith.addf %455, %456 : vector<1x64xf32>
    %458 = arith.mulf %442, %444 : vector<1x64xf32>
    %459 = arith.mulf %443, %446 : vector<1x64xf32>
    %460 = arith.addf %458, %459 : vector<1x64xf32>
    %461 = arith.mulf %444, %447 : vector<1x64xf32>
    %462 = arith.addf %460, %461 : vector<1x64xf32>
    %463 = arith.mulf %443, %443 : vector<1x64xf32>
    %464 = arith.mulf %445, %445 : vector<1x64xf32>
    %465 = arith.addf %463, %464 : vector<1x64xf32>
    %466 = arith.mulf %446, %446 : vector<1x64xf32>
    %467 = arith.addf %465, %466 : vector<1x64xf32>
    %468 = arith.mulf %443, %444 : vector<1x64xf32>
    %469 = arith.mulf %445, %446 : vector<1x64xf32>
    %470 = arith.addf %468, %469 : vector<1x64xf32>
    %471 = arith.mulf %446, %447 : vector<1x64xf32>
    %472 = arith.addf %470, %471 : vector<1x64xf32>
    %473 = arith.mulf %444, %444 : vector<1x64xf32>
    %474 = arith.mulf %446, %446 : vector<1x64xf32>
    %475 = arith.addf %473, %474 : vector<1x64xf32>
    %476 = arith.mulf %447, %447 : vector<1x64xf32>
    %477 = arith.addf %475, %476 : vector<1x64xf32>
    %478 = arith.mulf %452, %452 : vector<1x64xf32>
    %479 = arith.mulf %457, %457 : vector<1x64xf32>
    %480 = arith.addf %478, %479 : vector<1x64xf32>
    %481 = arith.mulf %462, %462 : vector<1x64xf32>
    %482 = arith.addf %480, %481 : vector<1x64xf32>
    %483 = arith.mulf %452, %457 : vector<1x64xf32>
    %484 = arith.mulf %457, %467 : vector<1x64xf32>
    %485 = arith.addf %483, %484 : vector<1x64xf32>
    %486 = arith.mulf %462, %472 : vector<1x64xf32>
    %487 = arith.addf %485, %486 : vector<1x64xf32>
    %488 = arith.mulf %452, %462 : vector<1x64xf32>
    %489 = arith.mulf %457, %472 : vector<1x64xf32>
    %490 = arith.addf %488, %489 : vector<1x64xf32>
    %491 = arith.mulf %462, %477 : vector<1x64xf32>
    %492 = arith.addf %490, %491 : vector<1x64xf32>
    %493 = arith.mulf %457, %457 : vector<1x64xf32>
    %494 = arith.mulf %467, %467 : vector<1x64xf32>
    %495 = arith.addf %493, %494 : vector<1x64xf32>
    %496 = arith.mulf %472, %472 : vector<1x64xf32>
    %497 = arith.addf %495, %496 : vector<1x64xf32>
    %498 = arith.mulf %457, %462 : vector<1x64xf32>
    %499 = arith.mulf %467, %472 : vector<1x64xf32>
    %500 = arith.addf %498, %499 : vector<1x64xf32>
    %501 = arith.mulf %472, %477 : vector<1x64xf32>
    %502 = arith.addf %500, %501 : vector<1x64xf32>
    %503 = arith.mulf %462, %462 : vector<1x64xf32>
    %504 = arith.mulf %472, %472 : vector<1x64xf32>
    %505 = arith.addf %503, %504 : vector<1x64xf32>
    %506 = arith.mulf %477, %477 : vector<1x64xf32>
    %507 = arith.addf %505, %506 : vector<1x64xf32>
    %508 = arith.addf %482, %497 : vector<1x64xf32>
    %509 = arith.addf %508, %507 : vector<1x64xf32>
    %cst_37 = arith.constant 1.000000e-30 : f32
    %510 = vector.broadcast %cst_37 : f32 to vector<1x64xf32>
    %511 = arith.addf %509, %510 : vector<1x64xf32>
    %512 = tpu.reciprocal %511 {approx = true} : vector<1x64xf32> -> vector<1x64xf32>
    %513 = arith.mulf %482, %512 : vector<1x64xf32>
    %514 = arith.mulf %487, %512 : vector<1x64xf32>
    %515 = arith.mulf %492, %512 : vector<1x64xf32>
    %516 = arith.mulf %497, %512 : vector<1x64xf32>
    %517 = arith.mulf %502, %512 : vector<1x64xf32>
    %518 = arith.mulf %507, %512 : vector<1x64xf32>
    %519 = arith.cmpf oge, %513, %516 : vector<1x64xf32>
    %520 = arith.cmpf oge, %513, %518 : vector<1x64xf32>
    %521 = arith.andi %519, %520 : vector<1x64xi1>
    %522 = arith.cmpf oge, %516, %518 : vector<1x64xf32>
    %523 = arith.select %522, %514, %515 : vector<1x64xi1>, vector<1x64xf32>
    %524 = arith.select %521, %513, %523 : vector<1x64xi1>, vector<1x64xf32>
    %525 = arith.select %522, %516, %517 : vector<1x64xi1>, vector<1x64xf32>
    %526 = arith.select %521, %514, %525 : vector<1x64xi1>, vector<1x64xf32>
    %527 = arith.select %522, %517, %518 : vector<1x64xi1>, vector<1x64xf32>
    %528 = arith.select %521, %515, %527 : vector<1x64xi1>, vector<1x64xf32>
    %529 = arith.mulf %524, %524 : vector<1x64xf32>
    %530 = arith.mulf %526, %526 : vector<1x64xf32>
    %531 = arith.addf %529, %530 : vector<1x64xf32>
    %532 = arith.mulf %528, %528 : vector<1x64xf32>
    %533 = arith.addf %531, %532 : vector<1x64xf32>
    %cst_38 = arith.constant 1.000000e-24 : f32
    %534 = vector.broadcast %cst_38 : f32 to vector<1x64xf32>
    %535 = arith.cmpf olt, %533, %534 : vector<1x64xf32>
    %cst_39 = arith.constant 0.000000e+00 : f32
    %536 = vector.broadcast %cst_39 : f32 to vector<1x64xf32>
    %537 = arith.select %535, %536, %524 : vector<1x64xi1>, vector<1x64xf32>
    %cst_40 = arith.constant 0.000000e+00 : f32
    %538 = vector.broadcast %cst_40 : f32 to vector<1x64xf32>
    %539 = arith.select %535, %538, %526 : vector<1x64xi1>, vector<1x64xf32>
    %cst_41 = arith.constant 1.000000e+00 : f32
    %540 = vector.broadcast %cst_41 : f32 to vector<1x64xf32>
    %541 = arith.select %535, %540, %528 : vector<1x64xi1>, vector<1x64xf32>
    %542 = arith.mulf %537, %537 : vector<1x64xf32>
    %543 = arith.mulf %539, %539 : vector<1x64xf32>
    %544 = arith.addf %542, %543 : vector<1x64xf32>
    %545 = arith.mulf %541, %541 : vector<1x64xf32>
    %546 = arith.addf %544, %545 : vector<1x64xf32>
    %547 = math.rsqrt %546 : vector<1x64xf32>
    %548 = arith.mulf %537, %547 : vector<1x64xf32>
    %549 = arith.mulf %539, %547 : vector<1x64xf32>
    %550 = arith.mulf %541, %547 : vector<1x64xf32>
    %551 = vector.extract_strided_slice %7 {offsets = [0, 0], sizes = [1, 64], strides = [1, 1]} : vector<3x64xf32> to vector<1x64xf32>
    %552 = arith.mulf %548, %551 : vector<1x64xf32>
    %553 = vector.extract_strided_slice %7 {offsets = [1, 0], sizes = [1, 64], strides = [1, 1]} : vector<3x64xf32> to vector<1x64xf32>
    %554 = arith.mulf %549, %553 : vector<1x64xf32>
    %555 = arith.addf %552, %554 : vector<1x64xf32>
    %556 = vector.extract_strided_slice %7 {offsets = [2, 0], sizes = [1, 64], strides = [1, 1]} : vector<3x64xf32> to vector<1x64xf32>
    %557 = arith.mulf %550, %556 : vector<1x64xf32>
    %558 = arith.addf %555, %557 : vector<1x64xf32>
    %cst_42 = arith.constant 0.000000e+00 : f32
    %559 = vector.broadcast %cst_42 : f32 to vector<1x64xf32>
    %560 = arith.cmpf ogt, %558, %559 : vector<1x64xf32>
    %cst_43 = arith.constant -1.000000e+00 : f32
    %cst_44 = arith.constant 1.000000e+00 : f32
    %561 = vector.broadcast %cst_43 : f32 to vector<1x64xf32>
    %562 = vector.broadcast %cst_44 : f32 to vector<1x64xf32>
    %563 = arith.select %560, %561, %562 : vector<1x64xi1>, vector<1x64xf32>
    %564 = arith.mulf %548, %563 : vector<1x64xf32>
    %565 = arith.mulf %549, %563 : vector<1x64xf32>
    %566 = arith.mulf %550, %563 : vector<1x64xf32>
    %567 = tpu.concatenate %564, %565, %566 in 0 : vector<1x64xf32>, vector<1x64xf32>, vector<1x64xf32> -> vector<3x64xf32>
    %c0_45 = arith.constant 0 : index
    %c0_46 = arith.constant 0 : index
    %c0_47 = arith.constant 0 : index
    %568 = vector.load %arg6[%c0_45, %c0_46, %c0_47] : memref<1x3x64xf32, #tpu.memory_space<vmem>>, vector<1x3x64xf32>
    %569 = vector.shape_cast %568 : vector<1x3x64xf32> to vector<3x64xf32>
    %570 = vector.shape_cast %567 : vector<3x64xf32> to vector<1x3x64xf32>
    tpu.vector_store %arg6[%c0_45, %c0_46, %c0_47], %570 {strides = array<i32>} : memref<1x3x64xf32, #tpu.memory_space<vmem>>, vector<1x3x64xf32>,
    return
  }
  func.func @transform_0(%arg0: i32, %arg1: i32) -> (i32, i32, i32) {
    %c0_i32 = arith.constant 0 : i32
    %c0_i32_0 = arith.constant 0 : i32
    %c0_i32_1 = arith.constant 0 : i32
    return %arg0, %c0_i32, %c0_i32_0 : i32, i32, i32
  }
  func.func @transform_1(%arg0: i32, %arg1: i32) -> (i32, i32, i32) {
    %c0_i32 = arith.constant 0 : i32
    %c0_i32_0 = arith.constant 0 : i32
    %c0_i32_1 = arith.constant 0 : i32
    return %arg0, %c0_i32, %c0_i32_0 : i32, i32, i32
  }
  func.func @transform_2(%arg0: i32, %arg1: i32) -> (i32, i32, i32) {
    %c0_i32 = arith.constant 0 : i32
    %c0_i32_0 = arith.constant 0 : i32
    return %arg0, %c0_i32, %arg1 : i32, i32, i32
  }
  func.func @transform_3(%arg0: i32, %arg1: i32) -> (i32, i32, i32) {
    %c0_i32 = arith.constant 0 : i32
    %c0_i32_0 = arith.constant 0 : i32
    return %arg0, %c0_i32, %arg1 : i32, i32, i32
  }
  func.func @transform_4(%arg0: i32, %arg1: i32) -> (i32, i32, i32) {
    %c0_i32 = arith.constant 0 : i32
    %c0_i32_0 = arith.constant 0 : i32
    return %arg0, %c0_i32, %arg1 : i32, i32, i32
  }
}

</mosaic_0001>

<llo_original>
// kernel: tpu_custom_call.1
$region0: #{tpu_custom_call.1}
  #allocation0 [shape = 'u32[]', space=smem, size = 0x4, offset = 0x4, fixed_abs, tag = 'smem constant byte address 0x4 - core index']
  #allocation1 [shape = 'u32[144,128]{1,0:T(1,128)}', space=vmem, size = 0x12000, scoped, tag = 'internal scratch']
  %s0 = inlined_call_operand.vmem [shape: f32[2,64,5], index: 0, kind: input, shape index: {}]
  %s1 = inlined_call_operand.vmem [shape: f32[2,10,64], index: 1, kind: input, shape index: {}]
  %s2 = inlined_call_operand.vmem [shape: f32[2,3,64], index: 2, kind: input, shape index: {}]
  %s3 = inlined_call_operand.vmem [shape: f32[2,3,64], index: 3, kind: input, shape index: {}]
  %s4 = inlined_call_operand.vmem [shape: f32[2,3,64], index: 4, kind: output, shape index: {}]
  %s5 = sld [smem:[#allocation0]]
  $region56: #{tpu_custom_call.1} parent=0
    _
  %s7 = ssub.s32 1, %s5
  %s8 = scalar_select 0, %s7, %s5
  loop: start=0, step=1, limit=4
  $region2: #{tpu_custom_call.1} parent=0 // loop_pre_header
    _
  $region3: #{tpu_custom_call.1} parent=0 // loop_header
    %s10 = sphi 0, %s14
    %p11 = scmp.ge.s32.totalorder %s10, 4
    %s17 = sphi 0, %s29
    %s18 = sphi 0, %s25
    %s19 = sphi 0, %s17
    %s20 = sphi 0, %s18
    %s21 = sphi 0, %s19
    %s22 = sphi 0, %s20
    %s32 = sphi 0, %s34
    %s35 = sphi 0, %s32
    %s36 = sphi 0, %s35
    %s52 = sphi 0, %s36
    %s58 = sphi 0, %s60
    %s61 = sphi 0, %s58
    %s62 = sphi 0, %s61
    %s78 = sphi 0, %s62
    %s86 = sphi 0, %s88
    %s89 = sphi 0, %s86
    %s90 = sphi 0, %s89
    %s106 = sphi 0, %s90
    %s114 = sphi 0, %s116
    %s117 = sphi 0, %s114
    %s118 = sphi 0, %s117
    %s134 = sphi 0, %s118
    %s142 = sphi 0, %s144
    %s145 = sphi 0, %s142
    %s146 = sphi 0, %s145
    %s162 = sphi 0, %s146
  $region4: #{tpu_custom_call.1} parent=0 // loop_header_branch
    %13 = sbr.rel (%p11) target = $region8
  $region5: #{tpu_custom_call.1} parent=0 // loop_body
    %s15 = ssub.s32 %s10, 1
    %s16 = ssub.s32 %s10, 2
    %s23 = sadd.s32 1, %s18
    %p24 = scmp.ge.s32.totalorder %s23, 1
    %s25 = scalar_select %p24, 0, %s23
    %s26 = sadd.s32 1, %s17
    %s27 = scalar_select %p24, %s26, %s17
    %p28 = scmp.ge.s32.totalorder %s27, 2
    %s29 = scalar_select %p28, 0, %s27
    %s30 = ssub.s32 %s17, %s29
    %p31 = scmp.eq.s32.totalorder %s30, 0
    %s33 = sadd.s32 %s32, 1
    %s34 = scalar_select %p31, %s32, %s33
    %p37 = pneg %p31
    %p38 = scmp.eq.s32.totalorder %s10, 1
    %p39 = por %p37, %p38
    %p40 = scmp.ne.s32.totalorder %s32, %s35
    %p41 = scmp.eq.s32.totalorder %s10, 0
    %p42 = por %p40, %p41
    %p43 = scmp.ne.s32.totalorder %s32, %s35
    %p44 = scmp.eq.s32.totalorder %s15, 1
    %p45 = por %p43, %p44
    %p46 = scmp.ne.s32.totalorder %s35, %s36
    %p47 = scmp.eq.s32.totalorder %s15, 0
    %p48 = por %p46, %p47
    %p49 = scmp.ne.s32.totalorder %s35, %s36
    %p50 = scmp.eq.s32.totalorder %s16, 1
    %p51 = por %p49, %p50
    %p53 = scmp.ne.s32.totalorder %s36, %s52
    %p54 = scmp.eq.s32.totalorder %s16, 0
    %p55 = por %p53, %p54
    %s56 = ssub.s32 %s17, %s29
    %p57 = scmp.eq.s32.totalorder %s56, 0
    %s59 = sadd.s32 %s58, 1
    %s60 = scalar_select %p57, %s58, %s59
    %p63 = pneg %p57
    %p64 = scmp.eq.s32.totalorder %s10, 1
    %p65 = por %p63, %p64
    %p66 = scmp.ne.s32.totalorder %s58, %s61
    %p67 = scmp.eq.s32.totalorder %s10, 0
    %p68 = por %p66, %p67
    %p69 = scmp.ne.s32.totalorder %s58, %s61
    %p70 = scmp.eq.s32.totalorder %s15, 1
    %p71 = por %p69, %p70
    %p72 = scmp.ne.s32.totalorder %s61, %s62
    %p73 = scmp.eq.s32.totalorder %s15, 0
    %p74 = por %p72, %p73
    %p75 = scmp.ne.s32.totalorder %s61, %s62
    %p76 = scmp.eq.s32.totalorder %s16, 1
    %p77 = por %p75, %p76
    %p79 = scmp.ne.s32.totalorder %s62, %s78
    %p80 = scmp.eq.s32.totalorder %s16, 0
    %p81 = por %p79, %p80
    %s82 = ssub.s32 %s17, %s29
    %s83 = ssub.s32 %s18, %s25
    %s84 = sor.u32 %s82, %s83
    %p85 = scmp.eq.s32.totalorder %s84, 0
    %s87 = sadd.s32 %s86, 1
    %s88 = scalar_select %p85, %s86, %s87
    %p91 = pneg %p85
    %p92 = scmp.eq.s32.totalorder %s10, 1
    %p93 = por %p91, %p92
    %p94 = scmp.ne.s32.totalorder %s86, %s89
    %p95 = scmp.eq.s32.totalorder %s10, 0
    %p96 = por %p94, %p95
    %p97 = scmp.ne.s32.totalorder %s86, %s89
    %p98 = scmp.eq.s32.totalorder %s15, 1
    %p99 = por %p97, %p98
    %p100 = scmp.ne.s32.totalorder %s89, %s90
    %p101 = scmp.eq.s32.totalorder %s15, 0
    %p102 = por %p100, %p101
    %p103 = scmp.ne.s32.totalorder %s89, %s90
    %p104 = scmp.eq.s32.totalorder %s16, 1
    %p105 = por %p103, %p104
    %p107 = scmp.ne.s32.totalorder %s90, %s106
    %p108 = scmp.eq.s32.totalorder %s16, 0
    %p109 = por %p107, %p108
    %s110 = ssub.s32 %s17, %s29
    %s111 = ssub.s32 %s18, %s25
    %s112 = sor.u32 %s110, %s111
    %p113 = scmp.eq.s32.totalorder %s112, 0
    %s115 = sadd.s32 %s114, 1
    %s116 = scalar_select %p113, %s114, %s115
    %p119 = pneg %p113
    %p120 = scmp.eq.s32.totalorder %s10, 1
    %p121 = por %p119, %p120
    %p122 = scmp.ne.s32.totalorder %s114, %s117
    %p123 = scmp.eq.s32.totalorder %s10, 0
    %p124 = por %p122, %p123
    %p125 = scmp.ne.s32.totalorder %s114, %s117
    %p126 = scmp.eq.s32.totalorder %s15, 1
    %p127 = por %p125, %p126
    %p128 = scmp.ne.s32.totalorder %s117, %s118
    %p129 = scmp.eq.s32.totalorder %s15, 0
    %p130 = por %p128, %p129
    %p131 = scmp.ne.s32.totalorder %s117, %s118
    %p132 = scmp.eq.s32.totalorder %s16, 1
    %p133 = por %p131, %p132
    %p135 = scmp.ne.s32.totalorder %s118, %s134
    %p136 = scmp.eq.s32.totalorder %s16, 0
    %p137 = por %p135, %p136
    %s138 = ssub.s32 %s17, %s29
    %s139 = ssub.s32 %s18, %s25
    %s140 = sor.u32 %s138, %s139
    %p141 = scmp.eq.s32.totalorder %s140, 0
    %s143 = sadd.s32 %s142, 1
    %s144 = scalar_select %p141, %s142, %s143
    %p147 = pneg %p141
    %p148 = scmp.eq.s32.totalorder %s10, 1
    %p149 = por %p147, %p148
    %p150 = scmp.ne.s32.totalorder %s142, %s145
    %p151 = scmp.eq.s32.totalorder %s10, 0
    %p152 = por %p150, %p151
    %p153 = scmp.ne.s32.totalorder %s142, %s145
    %p154 = scmp.eq.s32.totalorder %s15, 1
    %p155 = por %p153, %p154
    %p156 = scmp.ne.s32.totalorder %s145, %s146
    %p157 = scmp.eq.s32.totalorder %s15, 0
    %p158 = por %p156, %p157
    %p159 = scmp.ne.s32.totalorder %s145, %s146
    %p160 = scmp.eq.s32.totalorder %s16, 1
    %p161 = por %p159, %p160
    %p163 = scmp.ne.s32.totalorder %s146, %s162
    %p164 = scmp.eq.s32.totalorder %s16, 0
    %p165 = por %p163, %p164
    %p166 = scmp.le.s32.totalorder 1, %s10
    %p167 = scmp.lt.s32.totalorder %s10, 3
    %p168 = pnand %p166, %p167
    %p169 = pneg %p168
    // Predicated region
    $region9: #{tpu_custom_call.1} parent=5 // pred_check
      _
    $region10: #{tpu_custom_call.1} parent=5 // pred_check_branch
      %171 = sbr.rel (%p168) target = $region12
    $region11: #{tpu_custom_call.1} parent=5 // pred_region
      %s172 = ssub.s32 %s10, 1
    $region12: #{tpu_custom_call.1} parent=5 // pred_fallthru
      _
    %p173 = scmp.lt.s32.totalorder %s10, 2
    // Predicated region
    $region13: #{tpu_custom_call.1} parent=5 // pred_check
      %p174 = pneg %p173
    $region14: #{tpu_custom_call.1} parent=5 // pred_check_branch
      %176 = sbr.rel (%p174) target = $region16
    $region15: #{tpu_custom_call.1} parent=5 // pred_region
      // Predicated region
      $region17: #{tpu_custom_call.1} parent=15 // pred_check
        %p177 = pneg %p42
      $region18: #{tpu_custom_call.1} parent=15 // pred_check_branch
        %179 = sbr.rel (%p177) target = $region20
      $region19: #{tpu_custom_call.1} parent=15 // pred_region
        %p180 = scmp.lt.s32.totalorder %s17, 1
        %s181 = scalar_select %p180, %s17, 1
        %s182 = smul.addr %s181, 8
        %s183 = smul.addr %s182, 8
        %s184 = scalar_lea.vmem %s0, %s183
      $region20: #{tpu_custom_call.1} parent=15 // pred_fallthru
        _
      // Predicated region
      $region21: #{tpu_custom_call.1} parent=15 // pred_check
        %p185 = pneg %p68
      $region22: #{tpu_custom_call.1} parent=15 // pred_check_branch
        %187 = sbr.rel (%p185) target = $region24
      $region23: #{tpu_custom_call.1} parent=15 // pred_region
        %p188 = scmp.lt.s32.totalorder %s17, 1
        %s189 = scalar_select %p188, %s17, 1
        %s190 = smul.addr %s189, 2
        %s191 = smul.addr %s190, 8
        %s192 = scalar_lea.vmem %s1, %s191
      $region24: #{tpu_custom_call.1} parent=15 // pred_fallthru
        _
      // Predicated region
      $region25: #{tpu_custom_call.1} parent=15 // pred_check
        %p193 = pneg %p96
      $region26: #{tpu_custom_call.1} parent=15 // pred_check_branch
        %195 = sbr.rel (%p193) target = $region28
      $region27: #{tpu_custom_call.1} parent=15 // pred_region
        %p196 = scmp.lt.s32.totalorder %s17, 1
        %s197 = scalar_select %p196, %s17, 1
        %p198 = scmp.lt.s32.totalorder %s18, 0
        %s199 = scalar_select %p198, %s18, 0
        %s200 = sadd.s32 %s199, %s197
        %s201 = smul.addr %s200, 4
        %s202 = scalar_lea.vmem %s2, %s201
      $region28: #{tpu_custom_call.1} parent=15 // pred_fallthru
        _
      // Predicated region
      $region29: #{tpu_custom_call.1} parent=15 // pred_check
        %p203 = pneg %p124
      $region30: #{tpu_custom_call.1} parent=15 // pred_check_branch
        %205 = sbr.rel (%p203) target = $region32
      $region31: #{tpu_custom_call.1} parent=15 // pred_region
        %p206 = scmp.lt.s32.totalorder %s17, 1
        %s207 = scalar_select %p206, %s17, 1
        %p208 = scmp.lt.s32.totalorder %s18, 0
        %s209 = scalar_select %p208, %s18, 0
        %s210 = sadd.s32 %s209, %s207
        %s211 = smul.addr %s210, 4
        %s212 = scalar_lea.vmem %s3, %s211
      $region32: #{tpu_custom_call.1} parent=15 // pred_fallthru
        _
    $region16: #{tpu_custom_call.1} parent=5 // pred_fallthru
      _
    %p213 = scmp.le.s32.totalorder 1, %s10
    %p214 = scmp.lt.s32.totalorder %s10, 3
    %p215 = pnand %p213, %p214
    %p216 = pneg %p215
    // Predicated region
    $region33: #{tpu_custom_call.1} parent=5 // pred_check
      _
    $region34: #{tpu_custom_call.1} parent=5 // pred_check_branch
      %218 = sbr.rel (%p215) target = $region36
    $region35: #{tpu_custom_call.1} parent=5 // pred_region
      %s219 = ssub.s32 %s10, 1
      %p220 = scmp.lt.s32.totalorder %s19, 1
      %s221 = scalar_select %p220, %s19, 1
      %s222 = smul.addr %s221, 8
      %s223 = smul.addr %s222, 8
      %s224 = scalar_lea.vmem %s0, %s223
      %p225 = pneg %p48
      %p226 = pneg %p45
      %p227 = scmp.lt.s32.totalorder %s19, 1
      %s228 = scalar_select %p227, %s19, 1
      %s229 = smul.addr %s228, 2
      %s230 = smul.addr %s229, 8
      %s231 = scalar_lea.vmem %s1, %s230
      %p232 = pneg %p74
      %p233 = pneg %p71
      %p234 = scmp.lt.s32.totalorder %s19, 1
      %s235 = scalar_select %p234, %s19, 1
      %p236 = scmp.lt.s32.totalorder %s20, 0
      %s237 = scalar_select %p236, %s20, 0
      %s238 = sadd.s32 %s237, %s235
      %s239 = smul.addr %s238, 4
      %s240 = scalar_lea.vmem %s2, %s239
      %p241 = pneg %p102
      %p242 = pneg %p99
      %p243 = scmp.lt.s32.totalorder %s19, 1
      %s244 = scalar_select %p243, %s19, 1
      %p245 = scmp.lt.s32.totalorder %s20, 0
      %s246 = scalar_select %p245, %s20, 0
      %s247 = sadd.s32 %s246, %s244
      %s248 = smul.addr %s247, 4
      %s249 = scalar_lea.vmem %s3, %s248
      %p250 = pneg %p130
      %p251 = pneg %p127
      %p252 = pneg %p158
      %p253 = pneg %p155
      %p254 = scmp.lt.s32.totalorder %s19, 1
      %s255 = scalar_select %p254, %s19, 1
      %p256 = scmp.lt.s32.totalorder %s20, 0
      %s257 = scalar_select %p256, %s20, 0
      %s258 = sadd.s32 %s257, %s255
      %s259 = smul.addr %s258, 4
      %s260 = scalar_lea.vmem %s4, %s259
      %p261 = scmp.lt.s32.totalorder %s19, 1
      %s262 = scalar_select %p261, %s19, 1
      %s263 = smul.addr %s262, 8
      %s264 = smul.addr %s263, 8
      %s265 = scalar_lea.vmem %s0, %s264
      %p266 = scmp.lt.s32.totalorder %s19, 1
      %s267 = scalar_select %p266, %s19, 1
      %s268 = smul.addr %s267, 2
      %s269 = smul.addr %s268, 8
      %s270 = scalar_lea.vmem %s1, %s269
      %p271 = scmp.lt.s32.totalorder %s19, 1
      %s272 = scalar_select %p271, %s19, 1
      %p273 = scmp.lt.s32.totalorder %s20, 0
      %s274 = scalar_select %p273, %s20, 0
      %s275 = sadd.s32 %s274, %s272
      %s276 = smul.addr %s275, 4
      %s277 = scalar_lea.vmem %s2, %s276
      %p278 = scmp.lt.s32.totalorder %s19, 1
      %s279 = scalar_select %p278, %s19, 1
      %p280 = scmp.lt.s32.totalorder %s20, 0
      %s281 = scalar_select %p280, %s20, 0
      %s282 = sadd.s32 %s281, %s279
      %s283 = smul.addr %s282, 4
      %s284 = scalar_lea.vmem %s3, %s283
      %p285 = scmp.lt.s32.totalorder %s19, 1
      %s286 = scalar_select %p285, %s19, 1
      %p287 = scmp.lt.s32.totalorder %s20, 0
      %s288 = scalar_select %p287, %s20, 0
      %s289 = sadd.s32 %s288, %s286
      %s290 = smul.addr %s289, 4
      %s291 = scalar_lea.vmem %s4, %s290
      %v294 = vld [vmem:[%s265] sm:$0xff]
      %v295 = vld [vmem:[%s265 + $0x8] sm:$0xff]
      %v296 = vld [vmem:[%s265 + $0x10] sm:$0xff]
      %v297 = vld [vmem:[%s265 + $0x18] sm:$0xff]
      %v298 = vld [vmem:[%s265 + $0x20] sm:$0xff]
      %v299 = vld [vmem:[%s265 + $0x28] sm:$0xff]
      %v300 = vld [vmem:[%s265 + $0x30] sm:$0xff]
      %v301 = vld [vmem:[%s265 + $0x38] sm:$0xff]
      %v302 = vld [vmem:[%s270] sm:$0xff]
      %v303 = vld [vmem:[%s270 + $0x8] sm:$0x3]
      %v304 = vld [vmem:[%s277] sm:$0x7]
      %v305 = vld [vmem:[%s284] sm:$0x7]
      %v306 = vmul.f32 %v304, %v304
      %v308 = vrot.slane %v306, 1
      %v310 = vadd.f32 %v306, %v308
      %v311 = vrot.slane %v306, 2
      %v313 = vadd.f32 %v310, %v311
      %v314 = vmul.f32 %v304, -2.0
      %v316 = vrot.slane %v313, 4
      %vm318 = vcmask 1040384
      %vm319 = vcmask 1041408
      %v320 = vsel %vm319, %v314, %v314
      %vm321 = vcmask 1042432
      %v322 = vsel %vm321, %v320, 1.0
      %vm323 = vcmask 1043456
      %v324 = vsel %vm323, %v322, %v316
      %vm325 = vcmask 39936
      %v327 = vsel %vm325, %v294, 0
      %v330 = vsel %vm325, %v295, 0
      %v333 = vsel %vm325, %v296, 0
      %v336 = vsel %vm325, %v297, 0
      %v339 = vsel %vm325, %v298, 0
      %v342 = vsel %vm325, %v299, 0
      %v345 = vsel %vm325, %v300, 0
      %v348 = vsel %vm325, %v301, 0
      %vm350 = vcmask 1044480
      %v352 = vsel %vm350, %v324, 0
      %354 = vmatprep.subr.mxu0 0.0
      %355 = vmatpush1.msra.mxu0 %v352
      %356 = vmatprep.subr.mxu0 0.0
      %357 = vmatpush1.msra.mxu0 0.0
      %358 = vmatprep.subr.mxu0 0.0
      %359 = vmatpush1.msra.mxu0 0.0
      %360 = vmatprep.subr.mxu0 0.0
      %361 = vmatpush1.msra.mxu0 0.0
      %362 = vmatprep.subr.mxu0 0.0
      %363 = vmatpush1.msra.mxu0 0.0
      %364 = vmatprep.subr.mxu0 0.0
      %365 = vmatpush1.msra.mxu0 0.0
      %366 = vmatprep.subr.mxu0 0.0
      %367 = vmatpush1.msra.mxu0 0.0
      %368 = vmatprep.subr.mxu0 0.0
      %369 = vmatpush1.msra.mxu0 0.0
      %370 = vmatprep.subr.mxu0 0.0
      %371 = vmatpush1.msra.mxu0 0.0
      %372 = vmatprep.subr.mxu0 0.0
      %373 = vmatpush1.msra.mxu0 0.0
      %374 = vmatprep.subr.mxu0 0.0
      %375 = vmatpush1.msra.mxu0 0.0
      %376 = vmatprep.subr.mxu0 0.0
      %377 = vmatpush1.msra.mxu0 0.0
      %378 = vmatprep.subr.mxu0 0.0
      %379 = vmatpush1.msra.mxu0 0.0
      %380 = vmatprep.subr.mxu0 0.0
      %381 = vmatpush1.msra.mxu0 0.0
      %382 = vmatprep.subr.mxu0 0.0
      %383 = vmatpush1.msra.mxu0 0.0
      %384 = vmatprep.subr.mxu0 0.0
      %385 = vmatpush1.msra.mxu0 0.0
      %386 = vmatprep.subr.mxu0 0.0
      %387 = vmatpush1.msra.mxu0 0.0
      %388 = vmatprep.subr.mxu0 0.0
      %389 = vmatpush1.msra.mxu0 0.0
      %390 = vmatprep.subr.mxu0 0.0
      %391 = vmatpush1.msra.mxu0 0.0
      %392 = vmatprep.subr.mxu0 0.0
      %393 = vmatpush1.msra.mxu0 0.0
      %394 = vmatprep.subr.mxu0 0.0
      %395 = vmatpush1.msra.mxu0 0.0
      %396 = vmatprep.subr.mxu0 0.0
      %397 = vmatpush1.msra.mxu0 0.0
      %398 = vmatprep.subr.mxu0 0.0
      %399 = vmatpush1.msra.mxu0 0.0
      %400 = vmatprep.subr.mxu0 0.0
      %401 = vmatpush1.msra.mxu0 0.0
      %402 = vmatprep.subr.mxu0 0.0
      %403 = vmatpush1.msra.mxu0 0.0
      %404 = vmatprep.subr.mxu0 0.0
      %405 = vmatpush1.msra.mxu0 0.0
      %406 = vmatprep.subr.mxu0 0.0
      %407 = vmatpush1.msra.mxu0 0.0
      %408 = vmatprep.subr.mxu0 0.0
      %409 = vmatpush1.msra.mxu0 0.0
      %410 = vmatprep.subr.mxu0 0.0
      %411 = vmatpush1.msra.mxu0 0.0
      %412 = vmatprep.subr.mxu0 0.0
      %413 = vmatpush1.msra.mxu0 0.0
      %414 = vmatprep.subr.mxu0 0.0
      %415 = vmatpush1.msra.mxu0 0.0
      %416 = vmatprep.subr.mxu0 0.0
      %417 = vmatpush1.msra.mxu0 0.0
      %418 = vmatprep.mubr.f32.mxu0 0.0
      %419 = vmatmul.mubr.f32.gmra.mrb[0].mxu0 %v327
      %v420 = vpop.f32.mrb[0].mxu0
      %v421 = vadd.f32 0.0, %v420
      %v422 = vpop.f32.mrb[0].mxu0
      %423 = vmatprep.mubr.f32.mxu0 0.0
      %424 = vmatmul.mubr.f32.gmra.mrb[0].mxu0 %v330
      %v425 = vpop.f32.mrb[0].mxu0
      %v426 = vadd.f32 0.0, %v425
      %v427 = vpop.f32.mrb[0].mxu0
      %428 = vmatprep.mubr.f32.mxu0 0.0
      %429 = vmatmul.mubr.f32.gmra.mrb[0].mxu0 %v333
      %v430 = vpop.f32.mrb[0].mxu0
      %v431 = vadd.f32 0.0, %v430
      %v432 = vpop.f32.mrb[0].mxu0
      %433 = vmatprep.mubr.f32.mxu0 0.0
      %434 = vmatmul.mubr.f32.gmra.mrb[0].mxu0 %v336
      %v435 = vpop.f32.mrb[0].mxu0
      %v436 = vadd.f32 0.0, %v435
      %v437 = vpop.f32.mrb[0].mxu0
      %438 = vmatprep.mubr.f32.mxu0 0.0
      %439 = vmatmul.mubr.f32.gmra.mrb[0].mxu0 %v339
      %v440 = vpop.f32.mrb[0].mxu0
      %v441 = vadd.f32 0.0, %v440
      %v442 = vpop.f32.mrb[0].mxu0
      %443 = vmatprep.mubr.f32.mxu0 0.0
      %444 = vmatmul.mubr.f32.gmra.mrb[0].mxu0 %v342
      %v445 = vpop.f32.mrb[0].mxu0
      %v446 = vadd.f32 0.0, %v445
      %v447 = vpop.f32.mrb[0].mxu0
      %448 = vmatprep.mubr.f32.mxu0 0.0
      %449 = vmatmul.mubr.f32.gmra.mrb[0].mxu0 %v345
      %v450 = vpop.f32.mrb[0].mxu0
      %v451 = vadd.f32 0.0, %v450
      %v452 = vpop.f32.mrb[0].mxu0
      %453 = vmatprep.mubr.f32.mxu0 0.0
      %454 = vmatmul.mubr.f32.gmra.mrb[0].mxu0 %v348
      %v455 = vpop.f32.mrb[0].mxu0
      %v456 = vadd.f32 0.0, %v455
      %v457 = vpop.f32.mrb[0].mxu0
      %458 = vdwg.mxu0
      %v459 = vpack.c.bf16 %v426, %v421
      %v460 = vpack.c.bf16 %v436, %v431
      %v461 = vpack.c.bf16 %v446, %v441
      %v462 = vpack.c.bf16 %v456, %v451
      loop: start=0, step=1, limit=14
      $region37: #{tpu_custom_call.1} parent=35 // loop_pre_header
        _
      $region38: #{tpu_custom_call.1} parent=35 // loop_header
        %s464 = sphi 0, %s468
        %p465 = scmp.ge.s32.totalorder %s464, 14
        %v469 = vphi 0.0, %v534
        %v470 = vphi 0.1225, %v535
      $region39: #{tpu_custom_call.1} parent=35 // loop_header_branch
        %467 = sbr.rel (%p465) target = $region43
      $region40: #{tpu_custom_call.1} parent=35 // loop_body
        %v471 = vadd.f32 %v469, %v470
        %v472 = vmul.f32 %v471, 0.5
        %v473 = vpack.c.bf16 %v472, %v472
        %v475 = vpack.i.b16 %v473, %v473
        %v477 = vlaneseq
        %v478 = vshrl.u32 %v477, 7
        %v479 = vsub.s32 0, %v478
        %v480 = vrot.slane %v475, %v479
        %vm481 = vcmp.le.bf16.partialorder %v459, %v480
        %vm482 = vcmp.le.bf16.partialorder %v460, %v480
        %vm483 = vcmp.le.bf16.partialorder %v461, %v480
        %vm484 = vcmp.le.bf16.partialorder %v462, %v480
        %v485 = vsel %vm481, 1065369472, 0
        %v486 = vsel %vm482, 1065369472, 0
        %v487 = vsel %vm483, 1065369472, 0
        %v488 = vsel %vm484, 1065369472, 0
        %vm489 = vcmask 523264
        %v491 = vsel %vm489, 1065369472, 0
        %493 = vmatprep.subr.bf16.mxu0 0
        %494 = vmatpush1.bf16.msra.mxu0 %v485
        %495 = vmatprep.subr.bf16.mxu0 0
        %496 = vmatpush1.bf16.msra.mxu0 %v486
        %497 = vmatprep.subr.bf16.mxu0 0
        %498 = vmatpush1.bf16.msra.mxu0 %v487
        %499 = vmatprep.subr.bf16.mxu0 0
        %500 = vmatpush1.bf16.msra.mxu0 %v488
        %501 = vmatprep.subr.bf16.mxu0 0
        %502 = vmatpush1.bf16.msra.mxu0 0
        %503 = vmatprep.subr.bf16.mxu0 0
        %504 = vmatpush1.bf16.msra.mxu0 0
        %505 = vmatprep.subr.bf16.mxu0 0
        %506 = vmatpush1.bf16.msra.mxu0 0
        %507 = vmatprep.subr.bf16.mxu0 0
        %508 = vmatpush1.bf16.msra.mxu0 0
        %509 = vmatprep.subr.bf16.mxu0 0
        %510 = vmatpush1.bf16.msra.mxu0 0
        %511 = vmatprep.subr.bf16.mxu0 0
        %512 = vmatpush1.bf16.msra.mxu0 0
        %513 = vmatprep.subr.bf16.mxu0 0
        %514 = vmatpush1.bf16.msra.mxu0 0
        %515 = vmatprep.subr.bf16.mxu0 0
        %516 = vmatpush1.bf16.msra.mxu0 0
        %517 = vmatprep.subr.bf16.mxu0 0
        %518 = vmatpush1.bf16.msra.mxu0 0
        %519 = vmatprep.subr.bf16.mxu0 0
        %520 = vmatpush1.bf16.msra.mxu0 0
        %521 = vmatprep.subr.bf16.mxu0 0
        %522 = vmatpush1.bf16.msra.mxu0 0
        %523 = vmatprep.subr.bf16.mxu0 0
        %524 = vmatpush1.bf16.msra.mxu0 0
        %525 = vmatprep.mubr.bf16.mxu0 0
        %526 = vmatmul.mubr.bf16.gmra.mrb[0].mxu0 %v491
        %v527 = vpop.f32.mrb[0].mxu0
        %v528 = vadd.f32 0.0, %v527
        %v529 = vpop.f32.mrb[0].mxu0
        %v530 = vpop.f32.mrb[0].mxu0
        %v531 = vpop.f32.mrb[0].mxu0
        %532 = vdwg.mxu0
        %vm533 = vcmp.ge.f32.partialorder %v528, 30.0
        %v534 = vsel %vm533, %v469, %v472
        %v535 = vsel %vm533, %v472, %v470
      $region41: #{tpu_custom_call.1} parent=35 // loop_footer
        %s468 = sadd.s32 1, %s464
      $region42: #{tpu_custom_call.1} parent=35 // loop_footer_branch
        %463 = sbr.rel target = $region38
      $region43: #{tpu_custom_call.1} parent=35 // loop_exit
        _
      %v536 = vlaneseq
      %v537 = vshrl.u32 %v536, 7
      %v538 = vsub.s32 0, %v537
      %v539 = vrot.slane %v470, %v538
      %vm540 = vcmp.le.f32.partialorder %v421, %v539
      %vm541 = vcmp.le.f32.partialorder %v426, %v539
      %vm542 = vcmp.le.f32.partialorder %v431, %v539
      %vm543 = vcmp.le.f32.partialorder %v436, %v539
      %vm544 = vcmp.le.f32.partialorder %v441, %v539
      %vm545 = vcmp.le.f32.partialorder %v446, %v539
      %vm546 = vcmp.le.f32.partialorder %v451, %v539
      %vm547 = vcmp.le.f32.partialorder %v456, %v539
      %v548 = vsel %vm540, 1.0, 0.0
      %v549 = vsel %vm541, 1.0, 0.0
      %v550 = vsel %vm542, 1.0, 0.0
      %v551 = vsel %vm543, 1.0, 0.0
      %v552 = vsel %vm544, 1.0, 0.0
      %v553 = vsel %vm545, 1.0, 0.0
      %v554 = vsel %vm546, 1.0, 0.0
      %v555 = vsel %vm547, 1.0, 0.0
      %vm556 = vcmask 523264
      %v558 = vsel %vm556, %v302, 0
      %v561 = vsel %vm556, %v303, 0
      %563 = vmatprep.subr.mxu0 0.0
      %564 = vmatpush1.msra.mxu0 %v548
      %565 = vmatprep.subr.mxu0 0.0
      %566 = vmatpush1.msra.mxu0 %v549
      %567 = vmatprep.subr.mxu0 0.0
      %568 = vmatpush1.msra.mxu0 %v550
      %569 = vmatprep.subr.mxu0 0.0
      %570 = vmatpush1.msra.mxu0 %v551
      %571 = vmatprep.subr.mxu0 0.0
      %572 = vmatpush1.msra.mxu0 %v552
      %573 = vmatprep.subr.mxu0 0.0
      %574 = vmatpush1.msra.mxu0 %v553
      %575 = vmatprep.subr.mxu0 0.0
      %576 = vmatpush1.msra.mxu0 %v554
      %577 = vmatprep.subr.mxu0 0.0
      %578 = vmatpush1.msra.mxu0 %v555
      %579 = vmatprep.subr.mxu0 0.0
      %580 = vmatpush1.msra.mxu0 0.0
      %581 = vmatprep.subr.mxu0 0.0
      %582 = vmatpush1.msra.mxu0 0.0
      %583 = vmatprep.subr.mxu0 0.0
      %584 = vmatpush1.msra.mxu0 0.0
      %585 = vmatprep.subr.mxu0 0.0
      %586 = vmatpush1.msra.mxu0 0.0
      %587 = vmatprep.subr.mxu0 0.0
      %588 = vmatpush1.msra.mxu0 0.0
      %589 = vmatprep.subr.mxu0 0.0
      %590 = vmatpush1.msra.mxu0 0.0
      %591 = vmatprep.subr.mxu0 0.0
      %592 = vmatpush1.msra.mxu0 0.0
      %593 = vmatprep.subr.mxu0 0.0
      %594 = vmatpush1.msra.mxu0 0.0
      %595 = vmatprep.subr.mxu0 0.0
      %596 = vmatpush1.msra.mxu0 0.0
      %597 = vmatprep.subr.mxu0 0.0
      %598 = vmatpush1.msra.mxu0 0.0
      %599 = vmatprep.subr.mxu0 0.0
      %600 = vmatpush1.msra.mxu0 0.0
      %601 = vmatprep.subr.mxu0 0.0
      %602 = vmatpush1.msra.mxu0 0.0
      %603 = vmatprep.subr.mxu0 0.0
      %604 = vmatpush1.msra.mxu0 0.0
      %605 = vmatprep.subr.mxu0 0.0
      %606 = vmatpush1.msra.mxu0 0.0
      %607 = vmatprep.subr.mxu0 0.0
      %608 = vmatpush1.msra.mxu0 0.0
      %609 = vmatprep.subr.mxu0 0.0
      %610 = vmatpush1.msra.mxu0 0.0
      %611 = vmatprep.subr.mxu0 0.0
      %612 = vmatpush1.msra.mxu0 0.0
      %613 = vmatprep.subr.mxu0 0.0
      %614 = vmatpush1.msra.mxu0 0.0
      %615 = vmatprep.subr.mxu0 0.0
      %616 = vmatpush1.msra.mxu0 0.0
      %617 = vmatprep.subr.mxu0 0.0
      %618 = vmatpush1.msra.mxu0 0.0
      %619 = vmatprep.subr.mxu0 0.0
      %620 = vmatpush1.msra.mxu0 0.0
      %621 = vmatprep.subr.mxu0 0.0
      %622 = vmatpush1.msra.mxu0 0.0
      %623 = vmatprep.subr.mxu0 0.0
      %624 = vmatpush1.msra.mxu0 0.0
      %625 = vmatprep.subr.mxu0 0.0
      %626 = vmatpush1.msra.mxu0 0.0
      %627 = vmatprep.mubr.f32.mxu0 0.0
      %628 = vmatmul.mubr.f32.gmra.mrb[0].mxu0 %v558
      %v629 = vpop.f32.mrb[0].mxu0
      %v630 = vadd.f32 0.0, %v629
      %v631 = vpop.f32.mrb[0].mxu0
      %632 = vmatprep.mubr.f32.mxu0 0.0
      %633 = vmatmul.mubr.f32.gmra.mrb[0].mxu0 %v561
      %v634 = vpop.f32.mrb[0].mxu0
      %v635 = vadd.f32 0.0, %v634
      %v636 = vpop.f32.mrb[0].mxu0
      %637 = vdwg.mxu0
      %v639 = vrot.slane %v630, 4
      %v641 = vmul.f32 %v630, %v639
      %v642 = vmul.f32 %v630, %v630
      %v644 = vrot.slane %v642, 5
      %v646 = vsub.f32 %v641, %v644
      %v647 = vadd.f32 %v646, 1e-12
      %v648 = vrot.slane %v630, 3
      %v650 = vmul.f32 %v630, %v648
      %v651 = vrot.slane %v630, 1
      %v653 = vmul.f32 %v630, %v651
      %v655 = vrot.slane %v653, 4
      %v657 = vsub.f32 %v650, %v655
      %v658 = vrot.slane %v630, 2
      %v660 = vmul.f32 %v630, %v658
      %v662 = vrot.slane %v660, 3
      %v664 = vsub.f32 %v660, %v662
      %v665 = vrot.slane %v642, 3
      %v667 = vsub.f32 %v653, %v665
      %v668 = vadd.f32 %v667, 1e-12
      %v669 = vmul.f32 %v635, %v630
      %v670 = vrot.slane %v653, 2
      %v672 = vsub.f32 %v669, %v670
      %v673 = vrot.slane %v630, 7
      %v675 = vmul.f32 %v635, %v673
      %v676 = vrot.slane %v642, 2
      %v678 = vsub.f32 %v675, %v676
      %v679 = vadd.f32 %v678, 1e-12
      %v681 = vrot.slane %v668, 3
      %v683 = vadd.f32 %v647, %v681
      %v685 = vrot.slane %v679, 5
      %v687 = vadd.f32 %v683, %v685
      %v688 = vmul.f32 %v687, 2.0
      %v689 = vadd.f32 %v688, 1e-30
      %v690 = vrcp.pop %v689
      %v691 = vsub.f32 %v687, %v647
      %v692 = vmul.f32 %v691, %v690
      %v693 = vsub.f32 %v687, %v681
      %v694 = vmul.f32 %v693, %v690
      %v695 = vsub.f32 %v687, %v685
      %v696 = vmul.f32 %v695, %v690
      %v697 = vsub.f32 0.0, %v657
      %v699 = vrot.slane %v690, 7
      %v701 = vmul.f32 %v697, %v699
      %v702 = vsub.f32 0.0, %v664
      %v703 = vrot.slane %v690, 6
      %v705 = vmul.f32 %v702, %v703
      %v706 = vsub.f32 0.0, %v672
      %v707 = vrot.slane %v690, 4
      %v709 = vmul.f32 %v706, %v707
      %v710 = vmul.f32 %v692, %v692
      %v711 = vmul.f32 %v701, %v701
      %v713 = vrot.slane %v711, 1
      %v715 = vadd.f32 %v710, %v713
      %v716 = vmul.f32 %v705, %v705
      %v718 = vrot.slane %v716, 2
      %v720 = vadd.f32 %v715, %v718
      %v722 = vrot.slane %v701, 1
      %v724 = vmul.f32 %v692, %v722
      %v726 = vrot.slane %v694, 7
      %v728 = vmul.f32 %v701, %v726
      %v730 = vrot.slane %v728, 1
      %v732 = vadd.f32 %v724, %v730
      %v734 = vrot.slane %v709, 2
      %v736 = vmul.f32 %v705, %v734
      %v738 = vrot.slane %v736, 2
      %v740 = vadd.f32 %v732, %v738
      %v742 = vrot.slane %v705, 2
      %v744 = vmul.f32 %v692, %v742
      %v745 = vrot.slane %v709, 3
      %v747 = vmul.f32 %v701, %v745
      %v749 = vrot.slane %v747, 1
      %v751 = vadd.f32 %v744, %v749
      %v753 = vrot.slane %v696, 6
      %v755 = vmul.f32 %v705, %v753
      %v757 = vrot.slane %v755, 2
      %v759 = vadd.f32 %v751, %v757
      %v760 = vmul.f32 %v694, %v694
      %v762 = vrot.slane %v760, 7
      %v764 = vadd.f32 %v711, %v762
      %v765 = vmul.f32 %v709, %v709
      %v767 = vrot.slane %v765, 3
      %v769 = vadd.f32 %v764, %v767
      %v770 = vrot.slane %v705, 1
      %v772 = vmul.f32 %v701, %v770
      %v773 = vrot.slane %v709, 4
      %v775 = vmul.f32 %v694, %v773
      %v777 = vrot.slane %v775, 7
      %v779 = vadd.f32 %v772, %v777
      %v780 = vrot.slane %v696, 4
      %v782 = vmul.f32 %v709, %v780
      %v784 = vrot.slane %v782, 3
      %v786 = vadd.f32 %v779, %v784
      %v787 = vrot.slane %v765, 2
      %v789 = vadd.f32 %v716, %v787
      %v790 = vmul.f32 %v696, %v696
      %v792 = vrot.slane %v790, 6
      %v794 = vadd.f32 %v789, %v792
      %v795 = vmul.f32 %v720, %v720
      %v796 = vmul.f32 %v740, %v740
      %v797 = vadd.f32 %v795, %v796
      %v798 = vmul.f32 %v759, %v759
      %v799 = vadd.f32 %v797, %v798
      %v800 = vmul.f32 %v720, %v740
      %v802 = vrot.slane %v769, 1
      %v804 = vmul.f32 %v740, %v802
      %v805 = vadd.f32 %v800, %v804
      %v807 = vrot.slane %v786, 1
      %v809 = vmul.f32 %v759, %v807
      %v810 = vadd.f32 %v805, %v809
      %v811 = vmul.f32 %v720, %v759
      %v812 = vmul.f32 %v740, %v807
      %v813 = vadd.f32 %v811, %v812
      %v815 = vrot.slane %v794, 2
      %v817 = vmul.f32 %v759, %v815
      %v818 = vadd.f32 %v813, %v817
      %v819 = vmul.f32 %v769, %v769
      %v821 = vrot.slane %v819, 1
      %v823 = vadd.f32 %v796, %v821
      %v824 = vmul.f32 %v786, %v786
      %v826 = vrot.slane %v824, 1
      %v828 = vadd.f32 %v823, %v826
      %v829 = vmul.f32 %v740, %v759
      %v830 = vmul.f32 %v769, %v786
      %v832 = vrot.slane %v830, 1
      %v834 = vadd.f32 %v829, %v832
      %v835 = vrot.slane %v794, 1
      %v837 = vmul.f32 %v786, %v835
      %v839 = vrot.slane %v837, 1
      %v841 = vadd.f32 %v834, %v839
      %v842 = vadd.f32 %v798, %v826
      %v843 = vmul.f32 %v794, %v794
      %v845 = vrot.slane %v843, 2
      %v847 = vadd.f32 %v842, %v845
      %v848 = vadd.f32 %v799, %v828
      %v849 = vadd.f32 %v848, %v847
      %v850 = vadd.f32 %v849, 1e-30
      %v851 = vrcp.pop %v850
      %v852 = vmul.f32 %v799, %v851
      %v853 = vmul.f32 %v810, %v851
      %v854 = vmul.f32 %v818, %v851
      %v855 = vmul.f32 %v828, %v851
      %v856 = vmul.f32 %v841, %v851
      %v857 = vmul.f32 %v847, %v851
      %v858 = vmul.f32 %v852, %v852
      %v859 = vmul.f32 %v853, %v853
      %v860 = vadd.f32 %v858, %v859
      %v861 = vmul.f32 %v854, %v854
      %v862 = vadd.f32 %v860, %v861
      %v863 = vmul.f32 %v852, %v853
      %v864 = vmul.f32 %v853, %v855
      %v865 = vadd.f32 %v863, %v864
      %v866 = vmul.f32 %v854, %v856
      %v867 = vadd.f32 %v865, %v866
      %v868 = vmul.f32 %v852, %v854
      %v869 = vmul.f32 %v853, %v856
      %v870 = vadd.f32 %v868, %v869
      %v871 = vmul.f32 %v854, %v857
      %v872 = vadd.f32 %v870, %v871
      %v873 = vmul.f32 %v855, %v855
      %v874 = vadd.f32 %v859, %v873
      %v875 = vmul.f32 %v856, %v856
      %v876 = vadd.f32 %v874, %v875
      %v877 = vmul.f32 %v853, %v854
      %v878 = vmul.f32 %v855, %v856
      %v879 = vadd.f32 %v877, %v878
      %v880 = vmul.f32 %v856, %v857
      %v881 = vadd.f32 %v879, %v880
      %v882 = vadd.f32 %v861, %v875
      %v883 = vmul.f32 %v857, %v857
      %v884 = vadd.f32 %v882, %v883
      %v885 = vmul.f32 %v862, %v862
      %v886 = vmul.f32 %v867, %v867
      %v887 = vadd.f32 %v885, %v886
      %v888 = vmul.f32 %v872, %v872
      %v889 = vadd.f32 %v887, %v888
      %v890 = vmul.f32 %v862, %v867
      %v891 = vmul.f32 %v867, %v876
      %v892 = vadd.f32 %v890, %v891
      %v893 = vmul.f32 %v872, %v881
      %v894 = vadd.f32 %v892, %v893
      %v895 = vmul.f32 %v862, %v872
      %v896 = vmul.f32 %v867, %v881
      %v897 = vadd.f32 %v895, %v896
      %v898 = vmul.f32 %v872, %v884
      %v899 = vadd.f32 %v897, %v898
      %v900 = vmul.f32 %v876, %v876
      %v901 = vadd.f32 %v886, %v900
      %v902 = vmul.f32 %v881, %v881
      %v903 = vadd.f32 %v901, %v902
      %v904 = vmul.f32 %v867, %v872
      %v905 = vmul.f32 %v876, %v881
      %v906 = vadd.f32 %v904, %v905
      %v907 = vmul.f32 %v881, %v884
      %v908 = vadd.f32 %v906, %v907
      %v909 = vadd.f32 %v888, %v902
      %v910 = vmul.f32 %v884, %v884
      %v911 = vadd.f32 %v909, %v910
      %v912 = vadd.f32 %v889, %v903
      %v913 = vadd.f32 %v912, %v911
      %v914 = vadd.f32 %v913, 1e-30
      %v915 = vrcp.pop %v914
      %v916 = vmul.f32 %v889, %v915
      %v917 = vmul.f32 %v894, %v915
      %v918 = vmul.f32 %v899, %v915
      %v919 = vmul.f32 %v903, %v915
      %v920 = vmul.f32 %v908, %v915
      %v921 = vmul.f32 %v911, %v915
      %v922 = vmul.f32 %v916, %v916
      %v923 = vmul.f32 %v917, %v917
      %v924 = vadd.f32 %v922, %v923
      %v925 = vmul.f32 %v918, %v918
      %v926 = vadd.f32 %v924, %v925
      %v927 = vmul.f32 %v916, %v917
      %v928 = vmul.f32 %v917, %v919
      %v929 = vadd.f32 %v927, %v928
      %v930 = vmul.f32 %v918, %v920
      %v931 = vadd.f32 %v929, %v930
      %v932 = vmul.f32 %v916, %v918
      %v933 = vmul.f32 %v917, %v920
      %v934 = vadd.f32 %v932, %v933
      %v935 = vmul.f32 %v918, %v921
      %v936 = vadd.f32 %v934, %v935
      %v937 = vmul.f32 %v919, %v919
      %v938 = vadd.f32 %v923, %v937
      %v939 = vmul.f32 %v920, %v920
      %v940 = vadd.f32 %v938, %v939
      %v941 = vmul.f32 %v917, %v918
      %v942 = vmul.f32 %v919, %v920
      %v943 = vadd.f32 %v941, %v942
      %v944 = vmul.f32 %v920, %v921
      %v945 = vadd.f32 %v943, %v944
      %v946 = vadd.f32 %v925, %v939
      %v947 = vmul.f32 %v921, %v921
      %v948 = vadd.f32 %v946, %v947
      %v949 = vmul.f32 %v926, %v926
      %v950 = vmul.f32 %v931, %v931
      %v951 = vadd.f32 %v949, %v950
      %v952 = vmul.f32 %v936, %v936
      %v953 = vadd.f32 %v951, %v952
      %v954 = vmul.f32 %v926, %v931
      %v955 = vmul.f32 %v931, %v940
      %v956 = vadd.f32 %v954, %v955
      %v957 = vmul.f32 %v936, %v945
      %v958 = vadd.f32 %v956, %v957
      %v959 = vmul.f32 %v926, %v936
      %v960 = vmul.f32 %v931, %v945
      %v961 = vadd.f32 %v959, %v960
      %v962 = vmul.f32 %v936, %v948
      %v963 = vadd.f32 %v961, %v962
      %v964 = vmul.f32 %v940, %v940
      %v965 = vadd.f32 %v950, %v964
      %v966 = vmul.f32 %v945, %v945
      %v967 = vadd.f32 %v965, %v966
      %v968 = vmul.f32 %v931, %v936
      %v969 = vmul.f32 %v940, %v945
      %v970 = vadd.f32 %v968, %v969
      %v971 = vmul.f32 %v945, %v948
      %v972 = vadd.f32 %v970, %v971
      %v973 = vadd.f32 %v952, %v966
      %v974 = vmul.f32 %v948, %v948
      %v975 = vadd.f32 %v973, %v974
      %v976 = vadd.f32 %v953, %v967
      %v977 = vadd.f32 %v976, %v975
      %v978 = vadd.f32 %v977, 1e-30
      %v979 = vrcp.pop %v978
      %v980 = vmul.f32 %v953, %v979
      %v981 = vmul.f32 %v958, %v979
      %v982 = vmul.f32 %v963, %v979
      %v983 = vmul.f32 %v967, %v979
      %v984 = vmul.f32 %v972, %v979
      %v985 = vmul.f32 %v975, %v979
      %v986 = vmul.f32 %v980, %v980
      %v987 = vmul.f32 %v981, %v981
      %v988 = vadd.f32 %v986, %v987
      %v989 = vmul.f32 %v982, %v982
      %v990 = vadd.f32 %v988, %v989
      %v991 = vmul.f32 %v980, %v981
      %v992 = vmul.f32 %v981, %v983
      %v993 = vadd.f32 %v991, %v992
      %v994 = vmul.f32 %v982, %v984
      %v995 = vadd.f32 %v993, %v994
      %v996 = vmul.f32 %v980, %v982
      %v997 = vmul.f32 %v981, %v984
      %v998 = vadd.f32 %v996, %v997
      %v999 = vmul.f32 %v982, %v985
      %v1000 = vadd.f32 %v998, %v999
      %v1001 = vmul.f32 %v983, %v983
      %v1002 = vadd.f32 %v987, %v1001
      %v1003 = vmul.f32 %v984, %v984
      %v1004 = vadd.f32 %v1002, %v1003
      %v1005 = vmul.f32 %v981, %v982
      %v1006 = vmul.f32 %v983, %v984
      %v1007 = vadd.f32 %v1005, %v1006
      %v1008 = vmul.f32 %v984, %v985
      %v1009 = vadd.f32 %v1007, %v1008
      %v1010 = vadd.f32 %v989, %v1003
      %v1011 = vmul.f32 %v985, %v985
      %v1012 = vadd.f32 %v1010, %v1011
      %v1013 = vmul.f32 %v990, %v990
      %v1014 = vmul.f32 %v995, %v995
      %v1015 = vadd.f32 %v1013, %v1014
      %v1016 = vmul.f32 %v1000, %v1000
      %v1017 = vadd.f32 %v1015, %v1016
      %v1018 = vmul.f32 %v990, %v995
      %v1019 = vmul.f32 %v995, %v1004
      %v1020 = vadd.f32 %v1018, %v1019
      %v1021 = vmul.f32 %v1000, %v1009
      %v1022 = vadd.f32 %v1020, %v1021
      %v1023 = vmul.f32 %v990, %v1000
      %v1024 = vmul.f32 %v995, %v1009
      %v1025 = vadd.f32 %v1023, %v1024
      %v1026 = vmul.f32 %v1000, %v1012
      %v1027 = vadd.f32 %v1025, %v1026
      %v1028 = vmul.f32 %v1004, %v1004
      %v1029 = vadd.f32 %v1014, %v1028
      %v1030 = vmul.f32 %v1009, %v1009
      %v1031 = vadd.f32 %v1029, %v1030
      %v1032 = vmul.f32 %v995, %v1000
      %v1033 = vmul.f32 %v1004, %v1009
      %v1034 = vadd.f32 %v1032, %v1033
      %v1035 = vmul.f32 %v1009, %v1012
      %v1036 = vadd.f32 %v1034, %v1035
      %v1037 = vadd.f32 %v1016, %v1030
      %v1038 = vmul.f32 %v1012, %v1012
      %v1039 = vadd.f32 %v1037, %v1038
      %v1040 = vadd.f32 %v1017, %v1031
      %v1041 = vadd.f32 %v1040, %v1039
      %v1042 = vadd.f32 %v1041, 1e-30
      %v1043 = vrcp.pop %v1042
      %v1044 = vmul.f32 %v1017, %v1043
      %v1045 = vmul.f32 %v1022, %v1043
      %v1046 = vmul.f32 %v1027, %v1043
      %v1047 = vmul.f32 %v1031, %v1043
      %v1048 = vmul.f32 %v1036, %v1043
      %v1049 = vmul.f32 %v1039, %v1043
      %v1050 = vmul.f32 %v1044, %v1044
      %v1051 = vmul.f32 %v1045, %v1045
      %v1052 = vadd.f32 %v1050, %v1051
      %v1053 = vmul.f32 %v1046, %v1046
      %v1054 = vadd.f32 %v1052, %v1053
      %v1055 = vmul.f32 %v1044, %v1045
      %v1056 = vmul.f32 %v1045, %v1047
      %v1057 = vadd.f32 %v1055, %v1056
      %v1058 = vmul.f32 %v1046, %v1048
      %v1059 = vadd.f32 %v1057, %v1058
      %v1060 = vmul.f32 %v1044, %v1046
      %v1061 = vmul.f32 %v1045, %v1048
      %v1062 = vadd.f32 %v1060, %v1061
      %v1063 = vmul.f32 %v1046, %v1049
      %v1064 = vadd.f32 %v1062, %v1063
      %v1065 = vmul.f32 %v1047, %v1047
      %v1066 = vadd.f32 %v1051, %v1065
      %v1067 = vmul.f32 %v1048, %v1048
      %v1068 = vadd.f32 %v1066, %v1067
      %v1069 = vmul.f32 %v1045, %v1046
      %v1070 = vmul.f32 %v1047, %v1048
      %v1071 = vadd.f32 %v1069, %v1070
      %v1072 = vmul.f32 %v1048, %v1049
      %v1073 = vadd.f32 %v1071, %v1072
      %v1074 = vadd.f32 %v1053, %v1067
      %v1075 = vmul.f32 %v1049, %v1049
      %v1076 = vadd.f32 %v1074, %v1075
      %v1077 = vmul.f32 %v1054, %v1054
      %v1078 = vmul.f32 %v1059, %v1059
      %v1079 = vadd.f32 %v1077, %v1078
      %v1080 = vmul.f32 %v1064, %v1064
      %v1081 = vadd.f32 %v1079, %v1080
      %v1082 = vmul.f32 %v1054, %v1059
      %v1083 = vmul.f32 %v1059, %v1068
      %v1084 = vadd.f32 %v1082, %v1083
      %v1085 = vmul.f32 %v1064, %v1073
      %v1086 = vadd.f32 %v1084, %v1085
      %v1087 = vmul.f32 %v1054, %v1064
      %v1088 = vmul.f32 %v1059, %v1073
      %v1089 = vadd.f32 %v1087, %v1088
      %v1090 = vmul.f32 %v1064, %v1076
      %v1091 = vadd.f32 %v1089, %v1090
      %v1092 = vmul.f32 %v1068, %v1068
      %v1093 = vadd.f32 %v1078, %v1092
      %v1094 = vmul.f32 %v1073, %v1073
      %v1095 = vadd.f32 %v1093, %v1094
      %v1096 = vmul.f32 %v1059, %v1064
      %v1097 = vmul.f32 %v1068, %v1073
      %v1098 = vadd.f32 %v1096, %v1097
      %v1099 = vmul.f32 %v1073, %v1076
      %v1100 = vadd.f32 %v1098, %v1099
      %v1101 = vadd.f32 %v1080, %v1094
      %v1102 = vmul.f32 %v1076, %v1076
      %v1103 = vadd.f32 %v1101, %v1102
      %v1104 = vadd.f32 %v1081, %v1095
      %v1105 = vadd.f32 %v1104, %v1103
      %v1106 = vadd.f32 %v1105, 1e-30
      %v1107 = vrcp.pop %v1106
      %v1108 = vmul.f32 %v1081, %v1107
      %v1109 = vmul.f32 %v1086, %v1107
      %v1110 = vmul.f32 %v1091, %v1107
      %v1111 = vmul.f32 %v1095, %v1107
      %v1112 = vmul.f32 %v1100, %v1107
      %v1113 = vmul.f32 %v1103, %v1107
      %v1114 = vmul.f32 %v1108, %v1108
      %v1115 = vmul.f32 %v1109, %v1109
      %v1116 = vadd.f32 %v1114, %v1115
      %v1117 = vmul.f32 %v1110, %v1110
      %v1118 = vadd.f32 %v1116, %v1117
      %v1119 = vmul.f32 %v1108, %v1109
      %v1120 = vmul.f32 %v1109, %v1111
      %v1121 = vadd.f32 %v1119, %v1120
      %v1122 = vmul.f32 %v1110, %v1112
      %v1123 = vadd.f32 %v1121, %v1122
      %v1124 = vmul.f32 %v1108, %v1110
      %v1125 = vmul.f32 %v1109, %v1112
      %v1126 = vadd.f32 %v1124, %v1125
      %v1127 = vmul.f32 %v1110, %v1113
      %v1128 = vadd.f32 %v1126, %v1127
      %v1129 = vmul.f32 %v1111, %v1111
      %v1130 = vadd.f32 %v1115, %v1129
      %v1131 = vmul.f32 %v1112, %v1112
      %v1132 = vadd.f32 %v1130, %v1131
      %v1133 = vmul.f32 %v1109, %v1110
      %v1134 = vmul.f32 %v1111, %v1112
      %v1135 = vadd.f32 %v1133, %v1134
      %v1136 = vmul.f32 %v1112, %v1113
      %v1137 = vadd.f32 %v1135, %v1136
      %v1138 = vadd.f32 %v1117, %v1131
      %v1139 = vmul.f32 %v1113, %v1113
      %v1140 = vadd.f32 %v1138, %v1139
      %v1141 = vmul.f32 %v1118, %v1118
      %v1142 = vmul.f32 %v1123, %v1123
      %v1143 = vadd.f32 %v1141, %v1142
      %v1144 = vmul.f32 %v1128, %v1128
      %v1145 = vadd.f32 %v1143, %v1144
      %v1146 = vmul.f32 %v1118, %v1123
      %v1147 = vmul.f32 %v1123, %v1132
      %v1148 = vadd.f32 %v1146, %v1147
      %v1149 = vmul.f32 %v1128, %v1137
      %v1150 = vadd.f32 %v1148, %v1149
      %v1151 = vmul.f32 %v1118, %v1128
      %v1152 = vmul.f32 %v1123, %v1137
      %v1153 = vadd.f32 %v1151, %v1152
      %v1154 = vmul.f32 %v1128, %v1140
      %v1155 = vadd.f32 %v1153, %v1154
      %v1156 = vmul.f32 %v1132, %v1132
      %v1157 = vadd.f32 %v1142, %v1156
      %v1158 = vmul.f32 %v1137, %v1137
      %v1159 = vadd.f32 %v1157, %v1158
      %v1160 = vmul.f32 %v1123, %v1128
      %v1161 = vmul.f32 %v1132, %v1137
      %v1162 = vadd.f32 %v1160, %v1161
      %v1163 = vmul.f32 %v1137, %v1140
      %v1164 = vadd.f32 %v1162, %v1163
      %v1165 = vadd.f32 %v1144, %v1158
      %v1166 = vmul.f32 %v1140, %v1140
      %v1167 = vadd.f32 %v1165, %v1166
      %v1168 = vadd.f32 %v1145, %v1159
      %v1169 = vadd.f32 %v1168, %v1167
      %v1170 = vadd.f32 %v1169, 1e-30
      %v1171 = vrcp.pop %v1170
      %v1172 = vmul.f32 %v1145, %v1171
      %v1173 = vmul.f32 %v1150, %v1171
      %v1174 = vmul.f32 %v1155, %v1171
      %v1175 = vmul.f32 %v1159, %v1171
      %v1176 = vmul.f32 %v1164, %v1171
      %v1177 = vmul.f32 %v1167, %v1171
      %vm1178 = vcmp.ge.f32.partialorder %v1172, %v1175
      %vm1179 = vcmp.ge.f32.partialorder %v1172, %v1177
      %vm1180 = vmand %vm1178, %vm1179
      %vm1181 = vcmp.ge.f32.partialorder %v1175, %v1177
      %v1182 = vsel %vm1181, %v1173, %v1174
      %v1183 = vsel %vm1180, %v1172, %v1182
      %v1184 = vsel %vm1181, %v1175, %v1176
      %v1185 = vsel %vm1180, %v1173, %v1184
      %v1186 = vsel %vm1181, %v1176, %v1177
      %v1187 = vsel %vm1180, %v1174, %v1186
      %v1188 = vmul.f32 %v1183, %v1183
      %v1189 = vmul.f32 %v1185, %v1185
      %v1190 = vadd.f32 %v1188, %v1189
      %v1191 = vmul.f32 %v1187, %v1187
      %v1192 = vadd.f32 %v1190, %v1191
      %vm1193 = vcmp.lt.f32.partialorder %v1192, 1e-24
      %v1194 = vsel %vm1193, 0.0, %v1183
      %v1195 = vsel %vm1193, 0.0, %v1185
      %v1196 = vsel %vm1193, 1.0, %v1187
      %v1197 = vmul.f32 %v1194, %v1194
      %v1198 = vmul.f32 %v1195, %v1195
      %v1199 = vadd.f32 %v1197, %v1198
      %v1200 = vmul.f32 %v1196, %v1196
      %v1201 = vadd.f32 %v1199, %v1200
      %v1202 = vrsqrt.pop %v1201
      %v1203 = vmul.f32 %v1194, %v1202
      %v1204 = vmul.f32 %v1195, %v1202
      %v1205 = vmul.f32 %v1196, %v1202
      %v1207 = vrot.slane %v305, 4
      %v1209 = vmul.f32 %v1203, %v1207
      %v1210 = vrot.slane %v305, 5
      %v1212 = vmul.f32 %v1204, %v1210
      %v1213 = vadd.f32 %v1209, %v1212
      %v1214 = vrot.slane %v305, 6
      %v1216 = vmul.f32 %v1205, %v1214
      %v1217 = vadd.f32 %v1213, %v1216
      %vm1218 = vcmp.gt.f32.partialorder %v1217, 0.0
      %v1219 = vsel %vm1218, -1.0, 1.0
      %v1220 = vmul.f32 %v1203, %v1219
      %v1221 = vmul.f32 %v1204, %v1219
      %v1222 = vmul.f32 %v1205, %v1219
      %v1224 = vrot.slane %v1220, 4
      %v1227 = vrot.slane %v1221, 3
      %v1230 = vrot.slane %v1222, 2
      %v1232 = vsel %vm318, %v1224, %v1227
      %v1233 = vsel %vm319, %v1232, %v1230
      %vm1234 = vcmask 518144
      %1235 = vst.msk [vmem:[%s291] sm:$0x7] %vm1234, %v1233
      %p1236 = scmp.lt.s32.totalorder %s19, 1
      %s1237 = scalar_select %p1236, %s19, 1
      %p1238 = scmp.lt.s32.totalorder %s20, 0
      %s1239 = scalar_select %p1238, %s20, 0
      %s1240 = sadd.s32 %s1239, %s1237
      %s1241 = smul.addr %s1240, 4
      %s1242 = scalar_lea.vmem %s4, %s1241
      // Predicated region
      $region44: #{tpu_custom_call.1} parent=35 // pred_check
        %p1243 = pneg %p155
      $region45: #{tpu_custom_call.1} parent=35 // pred_check_branch
        %1245 = sbr.rel (%p1243) target = $region47
      $region46: #{tpu_custom_call.1} parent=35 // pred_region
        _
      $region47: #{tpu_custom_call.1} parent=35 // pred_fallthru
        _
    $region36: #{tpu_custom_call.1} parent=5 // pred_fallthru
      _
    %p1246 = scmp.le.s32.totalorder 2, %s10
    // Predicated region
    $region48: #{tpu_custom_call.1} parent=5 // pred_check
      %p1247 = pneg %p1246
    $region49: #{tpu_custom_call.1} parent=5 // pred_check_branch
      %1249 = sbr.rel (%p1247) target = $region51
    $region50: #{tpu_custom_call.1} parent=5 // pred_region
      %s1250 = ssub.s32 %s10, 2
      // Predicated region
      $region52: #{tpu_custom_call.1} parent=50 // pred_check
        %p1251 = pneg %p161
      $region53: #{tpu_custom_call.1} parent=50 // pred_check_branch
        %1253 = sbr.rel (%p1251) target = $region55
      $region54: #{tpu_custom_call.1} parent=50 // pred_region
        %p1254 = scmp.lt.s32.totalorder %s21, 1
        %s1255 = scalar_select %p1254, %s21, 1
        %p1256 = scmp.lt.s32.totalorder %s22, 0
        %s1257 = scalar_select %p1256, %s22, 0
        %s1258 = sadd.s32 %s1257, %s1255
        %s1259 = smul.addr %s1258, 4
        %s1260 = scalar_lea.vmem %s4, %s1259
      $region55: #{tpu_custom_call.1} parent=50 // pred_fallthru
        _
    $region51: #{tpu_custom_call.1} parent=5 // pred_fallthru
      _
  $region6: #{tpu_custom_call.1} parent=0 // loop_footer
    %s14 = sadd.s32 1, %s10
  $region7: #{tpu_custom_call.1} parent=0 // loop_footer_branch
    %9 = sbr.rel target = $region3
  $region8: #{tpu_custom_call.1} parent=0 // loop_exit
    _

</llo_original>
